<compile_context>
chip_gen: v7x
topology: tpu7x:2x2x1
jax: 0.10.0
libtpu: 0.0.40
codegen_flags: <defaults>
</compile_context>

<pallas_src>
import functools

import jax
import jax.numpy as jnp
from jax.experimental import pallas as pl
from jax.experimental.pallas import tpu as pltpu

H1, H2, H3 = 512, 256, 128


def _round_up(x, m):
    return (x + m - 1) // m * m


def _pick_tile(B, batch_tile):
    """Batch-tile heuristic: big tiles for big B, balanced >=2 steps otherwise."""
    cap = min(max(_round_up(batch_tile, 256), 256), 2048)   # v7x VMEM cap
    if B <= 256:
        return _round_up(max(B, 8), 8)          # single small step
    nb = max(-(-B // cap), 2)                   # >= 2 steps: both v7x TCs busy
    tile = _round_up(-(-B // nb), 8)            # balance useful rows per step
    if tile >= 512:
        tile = _round_up(tile, 256)             # MXU-row fill for large tiles
    return min(tile, cap)


def mlp_kernel(x_ref,
               w1_ref, b1_ref,
               w2_ref, b2_ref,
               w3_ref, b3_ref,
               w4_ref, b4_ref,
               o_ref):
    # 4 MXU matmuls (bf16 operands, f32 accumulate) + f32 bias/ReLU per tile.
    x = x_ref[...].astype(jnp.bfloat16)
    h = jnp.dot(x, w1_ref[...], preferred_element_type=jnp.float32)
    h = jnp.maximum(h + b1_ref[...], 0.0)

    h = jnp.dot(h.astype(jnp.bfloat16), w2_ref[...],
                preferred_element_type=jnp.float32)
    h = jnp.maximum(h + b2_ref[...], 0.0)

    h = jnp.dot(h.astype(jnp.bfloat16), w3_ref[...],
                preferred_element_type=jnp.float32)
    h = jnp.maximum(h + b3_ref[...], 0.0)

    h = jnp.dot(h.astype(jnp.bfloat16), w4_ref[...],
                preferred_element_type=jnp.float32)
    o_ref[...] = (h + b4_ref[...]).astype(o_ref.dtype)


def prepare_params(params):
    """One-time cast: bf16 weights (MXU operands), f32 biases (VPU adds)."""
    prepared = {}
    for i in range(1, 5):
        prepared[f"w{i}"] = params[f"w{i}"].astype(jnp.bfloat16)
        prepared[f"b{i}"] = params[f"b{i}"].astype(jnp.float32)
    return prepared


@functools.partial(jax.jit, static_argnames=("batch_tile",))
def mlp_forward(x, params, batch_tile=1024):
    """x: (B, n_input) f32.  params: prepare_params() output
    (bf16 (in,out) weights, f32 (1,out) biases)."""
    B, n_input = x.shape
    n_output = params["w4"].shape[1]

    tile = _pick_tile(B, batch_tile)
    B_pad = _round_up(B, tile)
    nb = B_pad // tile

    # Only batch-row padding (rows are independent; zero rows are exact and
    # sliced off afterwards).  No feature/lane padding, no dtype pre-pass.
    xb = x if B_pad == B else jnp.pad(x, ((0, B_pad - B), (0, 0)))

    w1, b1 = params["w1"], params["b1"]
    w2, b2 = params["w2"], params["b2"]
    w3, b3 = params["w3"], params["b3"]
    w4, b4 = params["w4"], params["b4"]

    weight_elems = n_input * H1 + H1 * H2 + H2 * H3 + H3 * n_output
    flops = 2 * B_pad * weight_elems
    bytes_accessed = (B_pad * n_input * x.dtype.itemsize        # x stream
                      + weight_elems * w1.dtype.itemsize        # weights
                      + (H1 + H2 + H3 + n_output) * 4           # biases (f32)
                      + B_pad * n_output * 4)                   # out (f32)

    full = lambda shape: pl.BlockSpec(shape, lambda i: (0, 0))  # VMEM-resident

    out = pl.pallas_call(
        mlp_kernel,
        out_shape=jax.ShapeDtypeStruct((B_pad, n_output), jnp.float32),
        grid_spec=pltpu.PrefetchScalarGridSpec(
            num_scalar_prefetch=0,
            grid=(nb,),
            in_specs=[
                pl.BlockSpec((tile, n_input), lambda i: (i, 0)),   # x tile
                full((n_input, H1)), full((1, H1)),                # layer 1
                full((H1, H2)),      full((1, H2)),                # layer 2
                full((H2, H3)),      full((1, H3)),                # layer 3
                full((H3, n_output)), full((1, n_output)),         # predict
            ],
            out_specs=pl.BlockSpec((tile, n_output), lambda i: (i, 0)),
        ),
        compiler_params=pltpu.CompilerParams(
            dimension_semantics=("parallel",),
            vmem_limit_bytes=48 * 1024 * 1024,   # under v7x's 64 MiB physical
        ),
        cost_estimate=pl.CostEstimate(
            flops=flops, transcendentals=0, bytes_accessed=bytes_accessed),
    )(xb, w1, b1, w2, b2, w3, b3, w4, b4)

    return out if B_pad == B else out[:B]


def init_params(key, n_input, n_output):
    """Deterministic init mirroring nn.Linear's U(-1/sqrt(in), 1/sqrt(in))."""
    dims = [(n_input, H1), (H1, H2), (H2, H3), (H3, n_output)]
    params = {}
    for idx, (fan_in, fan_out) in enumerate(dims, start=1):
        key, kw, kb = jax.random.split(key, 3)
        bound = 1.0 / jnp.sqrt(jnp.float32(fan_in))
        params[f"w{idx}"] = jax.random.uniform(
            kw, (fan_in, fan_out), jnp.float32, -bound, bound)
        params[f"b{idx}"] = jax.random.uniform(
            kb, (1, fan_out), jnp.float32, -bound, bound)
    return params


def mlp_reference_f32(x, params):
    h = jnp.maximum(x @ params["w1"] + params["b1"], 0.0)
    h = jnp.maximum(h @ params["w2"] + params["b2"], 0.0)
    h = jnp.maximum(h @ params["w3"] + params["b3"], 0.0)
    return h @ params["w4"] + params["b4"]


def mlp_reference_bf16(x, params):
    """Matches the kernel's precision: bf16 MXU operands, f32 accumulate/bias."""
    dot = lambda a, w: jnp.dot(a.astype(jnp.bfloat16), w.astype(jnp.bfloat16),
                               preferred_element_type=jnp.float32)
    h = jnp.maximum(dot(x, params["w1"]) + params["b1"], 0.0)
    h = jnp.maximum(dot(h, params["w2"]) + params["b2"], 0.0)
    h = jnp.maximum(dot(h, params["w3"]) + params["b3"], 0.0)
    return dot(h, params["w4"]) + params["b4"]


if __name__ == "__main__":
    key = jax.random.PRNGKey(0)
    # Small shapes consistent with the module; batch=300 exercises the
    # balanced 2-step grid path (2 x 152 rows) and batch-row padding.
    n_input, n_output, batch = 32, 8, 300

    kx, kp = jax.random.split(key)
    x = jax.random.normal(kx, (batch, n_input), jnp.float32)
    params_f32 = init_params(kp, n_input, n_output)
    params = prepare_params(params_f32)       # cast weights to bf16 once

    out = mlp_forward(x, params)
    jax.block_until_ready(out)
    assert out.shape == (batch, n_output)

    ref16 = mlp_reference_bf16(x, params_f32)   # same precision as the kernel
    ref32 = mlp_reference_f32(x, params_f32)    # pure f32 reference (semantics)
    assert jnp.allclose(out, ref16, atol=1e-2, rtol=1e-2), \
        float(jnp.max(jnp.abs(out - ref16)))
    assert jnp.allclose(out, ref32, atol=1e-1, rtol=1e-1), \
        float(jnp.max(jnp.abs(out - ref32)))

    print("KERNEL_OK")
</pallas_src>

<mosaic_0001>
module attributes {stable_mosaic.version = 11 : i64} {
  func.func @mlp_kernel(%arg0: i32, %arg1: memref<152x32xf32, #tpu.memory_space<vmem>>, %arg2: memref<32x512xbf16, #tpu.memory_space<vmem>>, %arg3: memref<1x512xf32, #tpu.memory_space<vmem>>, %arg4: memref<512x256xbf16, #tpu.memory_space<vmem>>, %arg5: memref<1x256xf32, #tpu.memory_space<vmem>>, %arg6: memref<256x128xbf16, #tpu.memory_space<vmem>>, %arg7: memref<1x128xf32, #tpu.memory_space<vmem>>, %arg8: memref<128x8xbf16, #tpu.memory_space<vmem>>, %arg9: memref<1x8xf32, #tpu.memory_space<vmem>>, %arg10: memref<152x8xf32, #tpu.memory_space<vmem>>) attributes {dimension_semantics = [#tpu.dimension_semantics<parallel>], iteration_bounds = array<i64: 2>, scalar_prefetch = 0 : i64, scratch_operands = 0 : i64, tpu.core_type = #tpu.core_type<tc>, window_params = [{transform_indices = @transform_0, window_bounds = array<i64: 152, 32>}, {pipeline_mode = #tpu.pipeline_mode<synchronous>, transform_indices = @transform_1, window_bounds = array<i64: 32, 512>}, {pipeline_mode = #tpu.pipeline_mode<synchronous>, transform_indices = @transform_2, window_bounds = array<i64: 1, 512>}, {pipeline_mode = #tpu.pipeline_mode<synchronous>, transform_indices = @transform_3, window_bounds = array<i64: 512, 256>}, {pipeline_mode = #tpu.pipeline_mode<synchronous>, transform_indices = @transform_4, window_bounds = array<i64: 1, 256>}, {pipeline_mode = #tpu.pipeline_mode<synchronous>, transform_indices = @transform_5, window_bounds = array<i64: 256, 128>}, {pipeline_mode = #tpu.pipeline_mode<synchronous>, transform_indices = @transform_6, window_bounds = array<i64: 1, 128>}, {pipeline_mode = #tpu.pipeline_mode<synchronous>, transform_indices = @transform_7, window_bounds = array<i64: 128, 8>}, {pipeline_mode = #tpu.pipeline_mode<synchronous>, transform_indices = @transform_8, window_bounds = array<i64: 1, 8>}, {transform_indices = @transform_9, window_bounds = array<i64: 152, 8>}]} {
    %c0 = arith.constant 0 : index
    %c0_0 = arith.constant 0 : index
    %0 = vector.load %arg1[%c0, %c0_0] : memref<152x32xf32, #tpu.memory_space<vmem>>, vector<152x32xf32>
    %1 = arith.truncf %0 : vector<152x32xf32> to vector<152x32xbf16>
    %c0_1 = arith.constant 0 : index
    %c0_2 = arith.constant 0 : index
    %2 = vector.load %arg2[%c0_1, %c0_2] : memref<32x512xbf16, #tpu.memory_space<vmem>>, vector<32x512xbf16>
    %cst = arith.constant dense<0.000000e+00> : vector<152x512xf32>
    %3 = tpu.matmul %1, %2, %cst {dimension_numbers = #tpu.dot_dimension_numbers<[1], [0], [0], [1], [0, 0, 1, 1], [], []>} : vector<152x32xbf16>, vector<32x512xbf16>, vector<152x512xf32> -> vector<152x512xf32>
    %c0_3 = arith.constant 0 : index
    %c0_4 = arith.constant 0 : index
    %4 = vector.load %arg3[%c0_3, %c0_4] : memref<1x512xf32, #tpu.memory_space<vmem>>, vector<1x512xf32>
    %5 = vector.broadcast %4 : vector<1x512xf32> to vector<152x512xf32>
    %6 = arith.addf %3, %5 : vector<152x512xf32>
    %cst_5 = arith.constant 0.000000e+00 : f32
    %7 = vector.broadcast %cst_5 : f32 to vector<152x512xf32>
    %8 = arith.maximumf %6, %7 : vector<152x512xf32>
    %9 = arith.truncf %8 : vector<152x512xf32> to vector<152x512xbf16>
    %c0_6 = arith.constant 0 : index
    %c0_7 = arith.constant 0 : index
    %10 = vector.load %arg4[%c0_6, %c0_7] : memref<512x256xbf16, #tpu.memory_space<vmem>>, vector<512x256xbf16>
    %cst_8 = arith.constant dense<0.000000e+00> : vector<152x256xf32>
    %11 = tpu.matmul %9, %10, %cst_8 {dimension_numbers = #tpu.dot_dimension_numbers<[1], [0], [0], [1], [0, 0, 1, 1], [], []>} : vector<152x512xbf16>, vector<512x256xbf16>, vector<152x256xf32> -> vector<152x256xf32>
    %c0_9 = arith.constant 0 : index
    %c0_10 = arith.constant 0 : index
    %12 = vector.load %arg5[%c0_9, %c0_10] : memref<1x256xf32, #tpu.memory_space<vmem>>, vector<1x256xf32>
    %13 = vector.broadcast %12 : vector<1x256xf32> to vector<152x256xf32>
    %14 = arith.addf %11, %13 : vector<152x256xf32>
    %cst_11 = arith.constant 0.000000e+00 : f32
    %15 = vector.broadcast %cst_11 : f32 to vector<152x256xf32>
    %16 = arith.maximumf %14, %15 : vector<152x256xf32>
    %17 = arith.truncf %16 : vector<152x256xf32> to vector<152x256xbf16>
    %c0_12 = arith.constant 0 : index
    %c0_13 = arith.constant 0 : index
    %18 = vector.load %arg6[%c0_12, %c0_13] : memref<256x128xbf16, #tpu.memory_space<vmem>>, vector<256x128xbf16>
    %cst_14 = arith.constant dense<0.000000e+00> : vector<152x128xf32>
    %19 = tpu.matmul %17, %18, %cst_14 {dimension_numbers = #tpu.dot_dimension_numbers<[1], [0], [0], [1], [0, 0, 1, 1], [], []>} : vector<152x256xbf16>, vector<256x128xbf16>, vector<152x128xf32> -> vector<152x128xf32>
    %c0_15 = arith.constant 0 : index
    %c0_16 = arith.constant 0 : index
    %20 = vector.load %arg7[%c0_15, %c0_16] : memref<1x128xf32, #tpu.memory_space<vmem>>, vector<1x128xf32>
    %21 = vector.broadcast %20 : vector<1x128xf32> to vector<152x128xf32>
    %22 = arith.addf %19, %21 : vector<152x128xf32>
    %cst_17 = arith.constant 0.000000e+00 : f32
    %23 = vector.broadcast %cst_17 : f32 to vector<152x128xf32>
    %24 = arith.maximumf %22, %23 : vector<152x128xf32>
    %25 = arith.truncf %24 : vector<152x128xf32> to vector<152x128xbf16>
    %c0_18 = arith.constant 0 : index
    %c0_19 = arith.constant 0 : index
    %26 = vector.load %arg8[%c0_18, %c0_19] : memref<128x8xbf16, #tpu.memory_space<vmem>>, vector<128x8xbf16>
    %cst_20 = arith.constant dense<0.000000e+00> : vector<152x8xf32>
    %27 = tpu.matmul %25, %26, %cst_20 {dimension_numbers = #tpu.dot_dimension_numbers<[1], [0], [0], [1], [0, 0, 1, 1], [], []>} : vector<152x128xbf16>, vector<128x8xbf16>, vector<152x8xf32> -> vector<152x8xf32>
    %c0_21 = arith.constant 0 : index
    %c0_22 = arith.constant 0 : index
    %28 = vector.load %arg9[%c0_21, %c0_22] : memref<1x8xf32, #tpu.memory_space<vmem>>, vector<1x8xf32>
    %29 = vector.broadcast %28 : vector<1x8xf32> to vector<152x8xf32>
    %30 = arith.addf %27, %29 : vector<152x8xf32>
    %c0_23 = arith.constant 0 : index
    %c0_24 = arith.constant 0 : index
    %31 = vector.load %arg10[%c0_23, %c0_24] : memref<152x8xf32, #tpu.memory_space<vmem>>, vector<152x8xf32>
    tpu.vector_store %arg10[%c0_23, %c0_24], %30 {strides = array<i32>} : memref<152x8xf32, #tpu.memory_space<vmem>>, vector<152x8xf32>,
    return
  }
  func.func @transform_0(%arg0: i32) -> (i32, i32) {
    %c0_i32 = arith.constant 0 : i32
    %c0_i32_0 = arith.constant 0 : i32
    return %arg0, %c0_i32 : i32, i32
  }
  func.func @transform_1(%arg0: i32) -> (i32, i32) {
    %c0_i32 = arith.constant 0 : i32
    %c0_i32_0 = arith.constant 0 : i32
    %c0_i32_1 = arith.constant 0 : i32
    return %c0_i32, %c0_i32_0 : i32, i32
  }
  func.func @transform_2(%arg0: i32) -> (i32, i32) {
    %c0_i32 = arith.constant 0 : i32
    %c0_i32_0 = arith.constant 0 : i32
    %c0_i32_1 = arith.constant 0 : i32
    return %c0_i32, %c0_i32_0 : i32, i32
  }
  func.func @transform_3(%arg0: i32) -> (i32, i32) {
    %c0_i32 = arith.constant 0 : i32
    %c0_i32_0 = arith.constant 0 : i32
    %c0_i32_1 = arith.constant 0 : i32
    return %c0_i32, %c0_i32_0 : i32, i32
  }
  func.func @transform_4(%arg0: i32) -> (i32, i32) {
    %c0_i32 = arith.constant 0 : i32
    %c0_i32_0 = arith.constant 0 : i32
    %c0_i32_1 = arith.constant 0 : i32
    return %c0_i32, %c0_i32_0 : i32, i32
  }
  func.func @transform_5(%arg0: i32) -> (i32, i32) {
    %c0_i32 = arith.constant 0 : i32
    %c0_i32_0 = arith.constant 0 : i32
    %c0_i32_1 = arith.constant 0 : i32
    return %c0_i32, %c0_i32_0 : i32, i32
  }
  func.func @transform_6(%arg0: i32) -> (i32, i32) {
    %c0_i32 = arith.constant 0 : i32
    %c0_i32_0 = arith.constant 0 : i32
    %c0_i32_1 = arith.constant 0 : i32
    return %c0_i32, %c0_i32_0 : i32, i32
  }
  func.func @transform_7(%arg0: i32) -> (i32, i32) {
    %c0_i32 = arith.constant 0 : i32
    %c0_i32_0 = arith.constant 0 : i32
    %c0_i32_1 = arith.constant 0 : i32
    return %c0_i32, %c0_i32_0 : i32, i32
  }
  func.func @transform_8(%arg0: i32) -> (i32, i32) {
    %c0_i32 = arith.constant 0 : i32
    %c0_i32_0 = arith.constant 0 : i32
    %c0_i32_1 = arith.constant 0 : i32
    return %c0_i32, %c0_i32_0 : i32, i32
  }
  func.func @transform_9(%arg0: i32) -> (i32, i32) {
    %c0_i32 = arith.constant 0 : i32
    %c0_i32_0 = arith.constant 0 : i32
    return %arg0, %c0_i32 : i32, i32
  }
}

</mosaic_0001>

<llo_original>
// kernel: mlp_forward.1
$region0: #{mlp_forward.1}
  #allocation0 [shape = 'u32[]', space=smem, size = 0x4, offset = 0x4, fixed_abs, tag = 'smem constant byte address 0x4 - core index']
  #allocation1 [shape = 'u32[144,128]{1,0:T(1,128)}', space=vmem, size = 0x12000, scoped, tag = 'internal scratch']
  %s0 = inlined_call_operand.vmem [shape: f32[304,32], index: 0, kind: input, shape index: {}]
  %s1 = inlined_call_operand.vmem [shape: bf16[32,512], index: 1, kind: input, shape index: {}]
  %s2 = inlined_call_operand.vmem [shape: f32[1,512], index: 2, kind: input, shape index: {}]
  %s3 = inlined_call_operand.vmem [shape: bf16[512,256], index: 3, kind: input, shape index: {}]
  %s4 = inlined_call_operand.vmem [shape: f32[1,256], index: 4, kind: input, shape index: {}]
  %s5 = inlined_call_operand.vmem [shape: bf16[256,128], index: 5, kind: input, shape index: {}]
  %s6 = inlined_call_operand.vmem [shape: f32[1,128], index: 6, kind: input, shape index: {}]
  %s7 = inlined_call_operand.vmem [shape: bf16[128,8], index: 7, kind: input, shape index: {}]
  %s8 = inlined_call_operand.vmem [shape: f32[1,8], index: 8, kind: input, shape index: {}]
  %s9 = inlined_call_operand.vmem [shape: f32[304,8], index: 9, kind: output, shape index: {}]
  %s10 = sld [smem:[#allocation0]]
  $region69: #{mlp_forward.1} parent=0
    _
  %s12 = ssub.s32 1, %s10
  %s13 = scalar_select 0, %s12, %s10
  loop: start=0, step=1, limit=4
  $region2: #{mlp_forward.1} parent=0 // loop_pre_header
    _
  $region3: #{mlp_forward.1} parent=0 // loop_header
    %s15 = sphi 0, %s19
    %p16 = scmp.ge.s32.totalorder %s15, 4
    %s25 = sphi 0, %s27
    %s28 = sphi 0, %s25
    %s29 = sphi 0, %s28
    %s45 = sphi 0, %s29
    %s49 = sphi 0, %s49
    %s51 = sphi 0, %s49
    %s52 = sphi 0, %s51
    %s66 = sphi 0, %s52
    %s70 = sphi 0, %s70
    %s72 = sphi 0, %s70
    %s73 = sphi 0, %s72
    %s87 = sphi 0, %s73
    %s91 = sphi 0, %s91
    %s93 = sphi 0, %s91
    %s94 = sphi 0, %s93
    %s108 = sphi 0, %s94
    %s112 = sphi 0, %s112
    %s114 = sphi 0, %s112
    %s115 = sphi 0, %s114
    %s129 = sphi 0, %s115
    %s133 = sphi 0, %s133
    %s135 = sphi 0, %s133
    %s136 = sphi 0, %s135
    %s150 = sphi 0, %s136
    %s154 = sphi 0, %s154
    %s156 = sphi 0, %s154
    %s157 = sphi 0, %s156
    %s171 = sphi 0, %s157
    %s175 = sphi 0, %s175
    %s177 = sphi 0, %s175
    %s178 = sphi 0, %s177
    %s192 = sphi 0, %s178
    %s196 = sphi 0, %s196
    %s198 = sphi 0, %s196
    %s199 = sphi 0, %s198
    %s213 = sphi 0, %s199
    %s219 = sphi 0, %s221
    %s222 = sphi 0, %s219
    %s223 = sphi 0, %s222
    %s239 = sphi 0, %s223
  $region4: #{mlp_forward.1} parent=0 // loop_header_branch
    %18 = sbr.rel (%p16) target = $region8
  $region5: #{mlp_forward.1} parent=0 // loop_body
    %s20 = ssub.s32 %s15, 1
    %s21 = ssub.s32 %s15, 2
    %s22 = sadd.s32 %s15, 1
    %s23 = ssub.s32 %s15, %s22
    %p24 = scmp.eq.s32.totalorder %s23, 0
    %s26 = sadd.s32 %s25, 1
    %s27 = scalar_select %p24, %s25, %s26
    %p30 = pneg %p24
    %p31 = scmp.eq.s32.totalorder %s15, 1
    %p32 = por %p30, %p31
    %p33 = scmp.ne.s32.totalorder %s25, %s28
    %p34 = scmp.eq.s32.totalorder %s15, 0
    %p35 = por %p33, %p34
    %p36 = scmp.ne.s32.totalorder %s25, %s28
    %p37 = scmp.eq.s32.totalorder %s20, 1
    %p38 = por %p36, %p37
    %p39 = scmp.ne.s32.totalorder %s28, %s29
    %p40 = scmp.eq.s32.totalorder %s20, 0
    %p41 = por %p39, %p40
    %p42 = scmp.ne.s32.totalorder %s28, %s29
    %p43 = scmp.eq.s32.totalorder %s21, 1
    %p44 = por %p42, %p43
    %p46 = scmp.ne.s32.totalorder %s29, %s45
    %p47 = scmp.eq.s32.totalorder %s21, 0
    %p48 = por %p46, %p47
    %s50 = sadd.s32 %s49, 1
    %p53 = scmp.eq.s32.totalorder %s15, 1
    %p54 = scmp.ne.s32.totalorder %s49, %s51
    %p55 = scmp.eq.s32.totalorder %s15, 0
    %p56 = por %p54, %p55
    %p57 = scmp.ne.s32.totalorder %s49, %s51
    %p58 = scmp.eq.s32.totalorder %s20, 1
    %p59 = por %p57, %p58
    %p60 = scmp.ne.s32.totalorder %s51, %s52
    %p61 = scmp.eq.s32.totalorder %s20, 0
    %p62 = por %p60, %p61
    %p63 = scmp.ne.s32.totalorder %s51, %s52
    %p64 = scmp.eq.s32.totalorder %s21, 1
    %p65 = por %p63, %p64
    %p67 = scmp.ne.s32.totalorder %s52, %s66
    %p68 = scmp.eq.s32.totalorder %s21, 0
    %p69 = por %p67, %p68
    %s71 = sadd.s32 %s70, 1
    %p74 = scmp.eq.s32.totalorder %s15, 1
    %p75 = scmp.ne.s32.totalorder %s70, %s72
    %p76 = scmp.eq.s32.totalorder %s15, 0
    %p77 = por %p75, %p76
    %p78 = scmp.ne.s32.totalorder %s70, %s72
    %p79 = scmp.eq.s32.totalorder %s20, 1
    %p80 = por %p78, %p79
    %p81 = scmp.ne.s32.totalorder %s72, %s73
    %p82 = scmp.eq.s32.totalorder %s20, 0
    %p83 = por %p81, %p82
    %p84 = scmp.ne.s32.totalorder %s72, %s73
    %p85 = scmp.eq.s32.totalorder %s21, 1
    %p86 = por %p84, %p85
    %p88 = scmp.ne.s32.totalorder %s73, %s87
    %p89 = scmp.eq.s32.totalorder %s21, 0
    %p90 = por %p88, %p89
    %s92 = sadd.s32 %s91, 1
    %p95 = scmp.eq.s32.totalorder %s15, 1
    %p96 = scmp.ne.s32.totalorder %s91, %s93
    %p97 = scmp.eq.s32.totalorder %s15, 0
    %p98 = por %p96, %p97
    %p99 = scmp.ne.s32.totalorder %s91, %s93
    %p100 = scmp.eq.s32.totalorder %s20, 1
    %p101 = por %p99, %p100
    %p102 = scmp.ne.s32.totalorder %s93, %s94
    %p103 = scmp.eq.s32.totalorder %s20, 0
    %p104 = por %p102, %p103
    %p105 = scmp.ne.s32.totalorder %s93, %s94
    %p106 = scmp.eq.s32.totalorder %s21, 1
    %p107 = por %p105, %p106
    %p109 = scmp.ne.s32.totalorder %s94, %s108
    %p110 = scmp.eq.s32.totalorder %s21, 0
    %p111 = por %p109, %p110
    %s113 = sadd.s32 %s112, 1
    %p116 = scmp.eq.s32.totalorder %s15, 1
    %p117 = scmp.ne.s32.totalorder %s112, %s114
    %p118 = scmp.eq.s32.totalorder %s15, 0
    %p119 = por %p117, %p118
    %p120 = scmp.ne.s32.totalorder %s112, %s114
    %p121 = scmp.eq.s32.totalorder %s20, 1
    %p122 = por %p120, %p121
    %p123 = scmp.ne.s32.totalorder %s114, %s115
    %p124 = scmp.eq.s32.totalorder %s20, 0
    %p125 = por %p123, %p124
    %p126 = scmp.ne.s32.totalorder %s114, %s115
    %p127 = scmp.eq.s32.totalorder %s21, 1
    %p128 = por %p126, %p127
    %p130 = scmp.ne.s32.totalorder %s115, %s129
    %p131 = scmp.eq.s32.totalorder %s21, 0
    %p132 = por %p130, %p131
    %s134 = sadd.s32 %s133, 1
    %p137 = scmp.eq.s32.totalorder %s15, 1
    %p138 = scmp.ne.s32.totalorder %s133, %s135
    %p139 = scmp.eq.s32.totalorder %s15, 0
    %p140 = por %p138, %p139
    %p141 = scmp.ne.s32.totalorder %s133, %s135
    %p142 = scmp.eq.s32.totalorder %s20, 1
    %p143 = por %p141, %p142
    %p144 = scmp.ne.s32.totalorder %s135, %s136
    %p145 = scmp.eq.s32.totalorder %s20, 0
    %p146 = por %p144, %p145
    %p147 = scmp.ne.s32.totalorder %s135, %s136
    %p148 = scmp.eq.s32.totalorder %s21, 1
    %p149 = por %p147, %p148
    %p151 = scmp.ne.s32.totalorder %s136, %s150
    %p152 = scmp.eq.s32.totalorder %s21, 0
    %p153 = por %p151, %p152
    %s155 = sadd.s32 %s154, 1
    %p158 = scmp.eq.s32.totalorder %s15, 1
    %p159 = scmp.ne.s32.totalorder %s154, %s156
    %p160 = scmp.eq.s32.totalorder %s15, 0
    %p161 = por %p159, %p160
    %p162 = scmp.ne.s32.totalorder %s154, %s156
    %p163 = scmp.eq.s32.totalorder %s20, 1
    %p164 = por %p162, %p163
    %p165 = scmp.ne.s32.totalorder %s156, %s157
    %p166 = scmp.eq.s32.totalorder %s20, 0
    %p167 = por %p165, %p166
    %p168 = scmp.ne.s32.totalorder %s156, %s157
    %p169 = scmp.eq.s32.totalorder %s21, 1
    %p170 = por %p168, %p169
    %p172 = scmp.ne.s32.totalorder %s157, %s171
    %p173 = scmp.eq.s32.totalorder %s21, 0
    %p174 = por %p172, %p173
    %s176 = sadd.s32 %s175, 1
    %p179 = scmp.eq.s32.totalorder %s15, 1
    %p180 = scmp.ne.s32.totalorder %s175, %s177
    %p181 = scmp.eq.s32.totalorder %s15, 0
    %p182 = por %p180, %p181
    %p183 = scmp.ne.s32.totalorder %s175, %s177
    %p184 = scmp.eq.s32.totalorder %s20, 1
    %p185 = por %p183, %p184
    %p186 = scmp.ne.s32.totalorder %s177, %s178
    %p187 = scmp.eq.s32.totalorder %s20, 0
    %p188 = por %p186, %p187
    %p189 = scmp.ne.s32.totalorder %s177, %s178
    %p190 = scmp.eq.s32.totalorder %s21, 1
    %p191 = por %p189, %p190
    %p193 = scmp.ne.s32.totalorder %s178, %s192
    %p194 = scmp.eq.s32.totalorder %s21, 0
    %p195 = por %p193, %p194
    %s197 = sadd.s32 %s196, 1
    %p200 = scmp.eq.s32.totalorder %s15, 1
    %p201 = scmp.ne.s32.totalorder %s196, %s198
    %p202 = scmp.eq.s32.totalorder %s15, 0
    %p203 = por %p201, %p202
    %p204 = scmp.ne.s32.totalorder %s196, %s198
    %p205 = scmp.eq.s32.totalorder %s20, 1
    %p206 = por %p204, %p205
    %p207 = scmp.ne.s32.totalorder %s198, %s199
    %p208 = scmp.eq.s32.totalorder %s20, 0
    %p209 = por %p207, %p208
    %p210 = scmp.ne.s32.totalorder %s198, %s199
    %p211 = scmp.eq.s32.totalorder %s21, 1
    %p212 = por %p210, %p211
    %p214 = scmp.ne.s32.totalorder %s199, %s213
    %p215 = scmp.eq.s32.totalorder %s21, 0
    %p216 = por %p214, %p215
    %s217 = ssub.s32 %s15, %s22
    %p218 = scmp.eq.s32.totalorder %s217, 0
    %s220 = sadd.s32 %s219, 1
    %s221 = scalar_select %p218, %s219, %s220
    %p224 = pneg %p218
    %p225 = scmp.eq.s32.totalorder %s15, 1
    %p226 = por %p224, %p225
    %p227 = scmp.ne.s32.totalorder %s219, %s222
    %p228 = scmp.eq.s32.totalorder %s15, 0
    %p229 = por %p227, %p228
    %p230 = scmp.ne.s32.totalorder %s219, %s222
    %p231 = scmp.eq.s32.totalorder %s20, 1
    %p232 = por %p230, %p231
    %p233 = scmp.ne.s32.totalorder %s222, %s223
    %p234 = scmp.eq.s32.totalorder %s20, 0
    %p235 = por %p233, %p234
    %p236 = scmp.ne.s32.totalorder %s222, %s223
    %p237 = scmp.eq.s32.totalorder %s21, 1
    %p238 = por %p236, %p237
    %p240 = scmp.ne.s32.totalorder %s223, %s239
    %p241 = scmp.eq.s32.totalorder %s21, 0
    %p242 = por %p240, %p241
    %p243 = scmp.le.s32.totalorder 1, %s15
    %p244 = scmp.lt.s32.totalorder %s15, 3
    %p245 = pnand %p243, %p244
    %p246 = pneg %p245
    // Predicated region
    $region9: #{mlp_forward.1} parent=5 // pred_check
      _
    $region10: #{mlp_forward.1} parent=5 // pred_check_branch
      %248 = sbr.rel (%p245) target = $region12
    $region11: #{mlp_forward.1} parent=5 // pred_region
      %s249 = ssub.s32 %s15, 1
      // Predicated region
      $region13: #{mlp_forward.1} parent=11 // pred_check
        %p250 = pneg %p62
      $region14: #{mlp_forward.1} parent=11 // pred_check_branch
        %252 = sbr.rel (%p250) target = $region16
      $region15: #{mlp_forward.1} parent=11 // pred_region
        _
      $region16: #{mlp_forward.1} parent=11 // pred_fallthru
        _
      // Predicated region
      $region17: #{mlp_forward.1} parent=11 // pred_check
        %p253 = pneg %p83
      $region18: #{mlp_forward.1} parent=11 // pred_check_branch
        %255 = sbr.rel (%p253) target = $region20
      $region19: #{mlp_forward.1} parent=11 // pred_region
        _
      $region20: #{mlp_forward.1} parent=11 // pred_fallthru
        _
      // Predicated region
      $region21: #{mlp_forward.1} parent=11 // pred_check
        %p256 = pneg %p104
      $region22: #{mlp_forward.1} parent=11 // pred_check_branch
        %258 = sbr.rel (%p256) target = $region24
      $region23: #{mlp_forward.1} parent=11 // pred_region
        _
      $region24: #{mlp_forward.1} parent=11 // pred_fallthru
        _
      // Predicated region
      $region25: #{mlp_forward.1} parent=11 // pred_check
        %p259 = pneg %p125
      $region26: #{mlp_forward.1} parent=11 // pred_check_branch
        %261 = sbr.rel (%p259) target = $region28
      $region27: #{mlp_forward.1} parent=11 // pred_region
        _
      $region28: #{mlp_forward.1} parent=11 // pred_fallthru
        _
      // Predicated region
      $region29: #{mlp_forward.1} parent=11 // pred_check
        %p262 = pneg %p146
      $region30: #{mlp_forward.1} parent=11 // pred_check_branch
        %264 = sbr.rel (%p262) target = $region32
      $region31: #{mlp_forward.1} parent=11 // pred_region
        _
      $region32: #{mlp_forward.1} parent=11 // pred_fallthru
        _
      // Predicated region
      $region33: #{mlp_forward.1} parent=11 // pred_check
        %p265 = pneg %p167
      $region34: #{mlp_forward.1} parent=11 // pred_check_branch
        %267 = sbr.rel (%p265) target = $region36
      $region35: #{mlp_forward.1} parent=11 // pred_region
        _
      $region36: #{mlp_forward.1} parent=11 // pred_fallthru
        _
      // Predicated region
      $region37: #{mlp_forward.1} parent=11 // pred_check
        %p268 = pneg %p188
      $region38: #{mlp_forward.1} parent=11 // pred_check_branch
        %270 = sbr.rel (%p268) target = $region40
      $region39: #{mlp_forward.1} parent=11 // pred_region
        _
      $region40: #{mlp_forward.1} parent=11 // pred_fallthru
        _
      // Predicated region
      $region41: #{mlp_forward.1} parent=11 // pred_check
        %p271 = pneg %p209
      $region42: #{mlp_forward.1} parent=11 // pred_check_branch
        %273 = sbr.rel (%p271) target = $region44
      $region43: #{mlp_forward.1} parent=11 // pred_region
        _
      $region44: #{mlp_forward.1} parent=11 // pred_fallthru
        _
    $region12: #{mlp_forward.1} parent=5 // pred_fallthru
      _
    %p274 = scmp.lt.s32.totalorder %s15, 2
    // Predicated region
    $region45: #{mlp_forward.1} parent=5 // pred_check
      %p275 = pneg %p274
    $region46: #{mlp_forward.1} parent=5 // pred_check_branch
      %277 = sbr.rel (%p275) target = $region48
    $region47: #{mlp_forward.1} parent=5 // pred_region
      // Predicated region
      $region49: #{mlp_forward.1} parent=47 // pred_check
        %p278 = pneg %p35
      $region50: #{mlp_forward.1} parent=47 // pred_check_branch
        %280 = sbr.rel (%p278) target = $region52
      $region51: #{mlp_forward.1} parent=47 // pred_region
        %s281 = smul.u32 19, %s15
        %p282 = scmp.lt.s32.totalorder %s281, 37
        %s283 = scalar_select %p282, %s281, 37
        %s284 = smul.addr %s283, 8
        %s285 = scalar_lea.vmem %s0, %s284
        %s286 = smul.u32 19, %s15
      $region52: #{mlp_forward.1} parent=47 // pred_fallthru
        _
    $region48: #{mlp_forward.1} parent=5 // pred_fallthru
      _
    %p287 = scmp.le.s32.totalorder 1, %s15
    %p288 = scmp.lt.s32.totalorder %s15, 3
    %p289 = pnand %p287, %p288
    %p290 = pneg %p289
    // Predicated region
    $region53: #{mlp_forward.1} parent=5 // pred_check
      _
    $region54: #{mlp_forward.1} parent=5 // pred_check_branch
      %292 = sbr.rel (%p289) target = $region56
    $region55: #{mlp_forward.1} parent=5 // pred_region
      %s293 = ssub.s32 %s15, 1
      %s294 = smul.u32 19, %s20
      %p295 = scmp.lt.s32.totalorder %s294, 37
      %s296 = scalar_select %p295, %s294, 37
      %s297 = smul.addr %s296, 8
      %s298 = scalar_lea.vmem %s0, %s297
      %p299 = pneg %p41
      %p300 = pneg %p38
      %p301 = pneg %p62
      %p302 = pneg %p59
      %p303 = pneg %p83
      %p304 = pneg %p80
      %p305 = pneg %p104
      %p306 = pneg %p101
      %p307 = pneg %p125
      %p308 = pneg %p122
      %p309 = pneg %p146
      %p310 = pneg %p143
      %p311 = pneg %p167
      %p312 = pneg %p164
      %p313 = pneg %p188
      %p314 = pneg %p185
      %p315 = pneg %p209
      %p316 = pneg %p206
      %p317 = pneg %p235
      %p318 = pneg %p232
      %s319 = smul.u32 19, %s20
      %p320 = scmp.lt.s32.totalorder %s319, 37
      %s321 = scalar_select %p320, %s319, 37
      %s322 = smul.addr %s321, 8
      %s323 = scalar_lea.vmem %s9, %s322
      %s324 = smul.u32 19, %s20
      %p325 = scmp.lt.s32.totalorder %s324, 37
      %s326 = scalar_select %p325, %s324, 37
      %s327 = smul.addr %s326, 8
      %s328 = scalar_lea.vmem %s0, %s327
      %s329 = smul.u32 19, %s20
      %s330 = smul.u32 19, %s20
      %p331 = scmp.lt.s32.totalorder %s330, 37
      %s332 = scalar_select %p331, %s330, 37
      %s333 = smul.addr %s332, 8
      %s334 = scalar_lea.vmem %s9, %s333
      %s335 = smul.u32 19, %s20
      %v337 = vld [vmem:[%s328] sm:$0xff]
      %v338 = vld [vmem:[%s328 + $0x8] sm:$0xff]
      %v339 = vld [vmem:[%s328 + $0x10] sm:$0xff]
      %v340 = vld [vmem:[%s328 + $0x18] sm:$0xff]
      %v341 = vld [vmem:[%s328 + $0x20] sm:$0xff]
      %v342 = vld [vmem:[%s328 + $0x28] sm:$0xff]
      %v343 = vld [vmem:[%s328 + $0x30] sm:$0xff]
      %v344 = vld [vmem:[%s328 + $0x38] sm:$0xff]
      %v345 = vld [vmem:[%s328 + $0x40] sm:$0xff]
      %v346 = vld [vmem:[%s328 + $0x48] sm:$0xff]
      %v347 = vld [vmem:[%s328 + $0x50] sm:$0xff]
      %v348 = vld [vmem:[%s328 + $0x58] sm:$0xff]
      %v349 = vld [vmem:[%s328 + $0x60] sm:$0xff]
      %v350 = vld [vmem:[%s328 + $0x68] sm:$0xff]
      %v351 = vld [vmem:[%s328 + $0x70] sm:$0xff]
      %v352 = vld [vmem:[%s328 + $0x78] sm:$0xff]
      %v353 = vld [vmem:[%s328 + $0x80] sm:$0xff]
      %v354 = vld [vmem:[%s328 + $0x88] sm:$0xff]
      %v355 = vld [vmem:[%s328 + $0x90] sm:$0xff]
      %v356 = vpack.c.bf16 %v338, %v337
      %v357 = vpack.c.bf16 %v340, %v339
      %v358 = vpack.c.bf16 %v342, %v341
      %v359 = vpack.c.bf16 %v344, %v343
      %v360 = vpack.c.bf16 %v346, %v345
      %v361 = vpack.c.bf16 %v348, %v347
      %v362 = vpack.c.bf16 %v350, %v349
      %v363 = vpack.c.bf16 %v352, %v351
      %v364 = vpack.c.bf16 %v354, %v353
      %v365 = vpack.c.bf16 %v355, %v355
      %v366 = vld [vmem:[%s1] sm:$0xff]
      %v367 = vld [vmem:[%s1 + $0x8] sm:$0xff]
      %v368 = vld [vmem:[%s1 + $0x10] sm:$0xff]
      %v369 = vld [vmem:[%s1 + $0x18] sm:$0xff]
      %v370 = vld [vmem:[%s1 + $0x20] sm:$0xff]
      %v371 = vld [vmem:[%s1 + $0x28] sm:$0xff]
      %v372 = vld [vmem:[%s1 + $0x30] sm:$0xff]
      %v373 = vld [vmem:[%s1 + $0x38] sm:$0xff]
      %v374 = vld [vmem:[%s2] sm:$0xf]
      %v376 = vlaneseq
      %v377 = vshrl.u32 %v376, 7
      %v378 = vsub.s32 0, %v377
      %v379 = vrot.slane %v374, %v378
      %v380 = vlaneseq
      %v381 = vshrl.u32 %v380, 7
      %v382 = vsub.s32 1, %v381
      %v383 = vrot.slane %v374, %v382
      %v384 = vlaneseq
      %v385 = vshrl.u32 %v384, 7
      %v386 = vsub.s32 2, %v385
      %v387 = vrot.slane %v374, %v386
      %v388 = vlaneseq
      %v389 = vshrl.u32 %v388, 7
      %v390 = vsub.s32 3, %v389
      %v391 = vrot.slane %v374, %v390
      %v404 = vunpack.c.l.b16 %v366
      %v405 = vunpack.c.h.b16 %v366
      %v406 = vunpack.c.l.b16 %v367
      %v407 = vunpack.c.h.b16 %v367
      %v408 = vunpack.c.l.b16 %v368
      %v409 = vunpack.c.h.b16 %v368
      %v410 = vunpack.c.l.b16 %v369
      %v411 = vunpack.c.h.b16 %v369
      %v412 = vunpack.c.l.b16 %v370
      %v413 = vunpack.c.h.b16 %v370
      %v414 = vunpack.c.l.b16 %v371
      %v415 = vunpack.c.h.b16 %v371
      %v416 = vunpack.c.l.b16 %v372
      %v417 = vunpack.c.h.b16 %v372
      %v418 = vunpack.c.l.b16 %v373
      %v419 = vunpack.c.h.b16 %v373
      %v420 = vpack.c.b16 %v408, %v404
      %v421 = vpack.c.b16 %v409, %v405
      %v422 = vpack.c.b16 %v410, %v406
      %v423 = vpack.c.b16 %v411, %v407
      %v424 = vpack.c.b16 %v416, %v412
      %v425 = vpack.c.b16 %v417, %v413
      %v426 = vpack.c.b16 %v418, %v414
      %v427 = vpack.c.b16 %v419, %v415
      %vm436 = vcmask 261120
      %v438 = vsel %vm436, %v356, 0
      %v441 = vsel %vm436, %v357, 0
      %v444 = vsel %vm436, %v358, 0
      %v447 = vsel %vm436, %v359, 0
      %v450 = vsel %vm436, %v360, 0
      %v453 = vsel %vm436, %v361, 0
      %v456 = vsel %vm436, %v362, 0
      %v459 = vsel %vm436, %v363, 0
      %v462 = vsel %vm436, %v364, 0
      %v465 = vsel %vm436, %v365, 0
      %467 = vmatprep.subr.bf16.mxu0 %v421
      %468 = vmatpush1.bf16.msra.mxu0 %v420
      %469 = vmatprep.subr.bf16.mxu0 %v425
      %470 = vmatpush1.bf16.msra.mxu0 %v424
      %471 = vmatprep.subr.bf16.mxu0 0
      %472 = vmatpush1.bf16.msra.mxu0 0
      %473 = vmatprep.subr.bf16.mxu0 0
      %474 = vmatpush1.bf16.msra.mxu0 0
      %475 = vmatprep.subr.bf16.mxu0 0
      %476 = vmatpush1.bf16.msra.mxu0 0
      %477 = vmatprep.subr.bf16.mxu0 0
      %478 = vmatpush1.bf16.msra.mxu0 0
      %479 = vmatprep.subr.bf16.mxu0 0
      %480 = vmatpush1.bf16.msra.mxu0 0
      %481 = vmatprep.subr.bf16.mxu0 0
      %482 = vmatpush1.bf16.msra.mxu0 0
      %483 = vmatprep.subr.bf16.mxu0 0
      %484 = vmatpush1.bf16.msra.mxu0 0
      %485 = vmatprep.subr.bf16.mxu0 0
      %486 = vmatpush1.bf16.msra.mxu0 0
      %487 = vmatprep.subr.bf16.mxu0 0
      %488 = vmatpush1.bf16.msra.mxu0 0
      %489 = vmatprep.subr.bf16.mxu0 0
      %490 = vmatpush1.bf16.msra.mxu0 0
      %491 = vmatprep.subr.bf16.mxu0 0
      %492 = vmatpush1.bf16.msra.mxu0 0
      %493 = vmatprep.subr.bf16.mxu0 0
      %494 = vmatpush1.bf16.msra.mxu0 0
      %495 = vmatprep.subr.bf16.mxu0 0
      %496 = vmatpush1.bf16.msra.mxu0 0
      %497 = vmatprep.subr.bf16.mxu0 0
      %498 = vmatpush1.bf16.msra.mxu0 0
      %499 = vmatprep.mubr.bf16.mxu0 0
      %500 = vmatmul.mubr.bf16.gmra.mrb[0].mxu0 %v438
      %v501 = vpop.f32.mrb[0].mxu0
      %v502 = vadd.f32 %v379, %v501
      %v503 = vpop.f32.mrb[0].mxu0
      %v504 = vadd.f32 %v383, %v503
      %v505 = vpop.f32.mrb[0].mxu0
      %v506 = vadd.f32 %v379, %v505
      %v507 = vpop.f32.mrb[0].mxu0
      %v508 = vadd.f32 %v383, %v507
      %509 = vmatprep.mubr.bf16.mxu0 0
      %510 = vmatmul.mubr.bf16.gmra.mrb[0].mxu0 %v441
      %v511 = vpop.f32.mrb[0].mxu0
      %v512 = vadd.f32 %v379, %v511
      %v513 = vpop.f32.mrb[0].mxu0
      %v514 = vadd.f32 %v383, %v513
      %v515 = vpop.f32.mrb[0].mxu0
      %v516 = vadd.f32 %v379, %v515
      %v517 = vpop.f32.mrb[0].mxu0
      %v518 = vadd.f32 %v383, %v517
      %519 = vmatprep.mubr.bf16.mxu0 0
      %520 = vmatmul.mubr.bf16.gmra.mrb[0].mxu0 %v444
      %v521 = vpop.f32.mrb[0].mxu0
      %v522 = vadd.f32 %v379, %v521
      %v523 = vpop.f32.mrb[0].mxu0
      %v524 = vadd.f32 %v383, %v523
      %v525 = vpop.f32.mrb[0].mxu0
      %v526 = vadd.f32 %v379, %v525
      %v527 = vpop.f32.mrb[0].mxu0
      %v528 = vadd.f32 %v383, %v527
      %529 = vmatprep.mubr.bf16.mxu0 0
      %530 = vmatmul.mubr.bf16.gmra.mrb[0].mxu0 %v447
      %v531 = vpop.f32.mrb[0].mxu0
      %v532 = vadd.f32 %v379, %v531
      %v533 = vpop.f32.mrb[0].mxu0
      %v534 = vadd.f32 %v383, %v533
      %v535 = vpop.f32.mrb[0].mxu0
      %v536 = vadd.f32 %v379, %v535
      %v537 = vpop.f32.mrb[0].mxu0
      %v538 = vadd.f32 %v383, %v537
      %539 = vmatprep.mubr.bf16.mxu0 0
      %540 = vmatmul.mubr.bf16.gmra.mrb[0].mxu0 %v450
      %v541 = vpop.f32.mrb[0].mxu0
      %v542 = vadd.f32 %v379, %v541
      %v543 = vpop.f32.mrb[0].mxu0
      %v544 = vadd.f32 %v383, %v543
      %v545 = vpop.f32.mrb[0].mxu0
      %v546 = vadd.f32 %v379, %v545
      %v547 = vpop.f32.mrb[0].mxu0
      %v548 = vadd.f32 %v383, %v547
      %549 = vmatprep.mubr.bf16.mxu0 0
      %550 = vmatmul.mubr.bf16.gmra.mrb[0].mxu0 %v453
      %v551 = vpop.f32.mrb[0].mxu0
      %v552 = vadd.f32 %v379, %v551
      %v553 = vpop.f32.mrb[0].mxu0
      %v554 = vadd.f32 %v383, %v553
      %v555 = vpop.f32.mrb[0].mxu0
      %v556 = vadd.f32 %v379, %v555
      %v557 = vpop.f32.mrb[0].mxu0
      %v558 = vadd.f32 %v383, %v557
      %559 = vmatprep.mubr.bf16.mxu0 0
      %560 = vmatmul.mubr.bf16.gmra.mrb[0].mxu0 %v456
      %v561 = vpop.f32.mrb[0].mxu0
      %v562 = vadd.f32 %v379, %v561
      %v563 = vpop.f32.mrb[0].mxu0
      %v564 = vadd.f32 %v383, %v563
      %v565 = vpop.f32.mrb[0].mxu0
      %v566 = vadd.f32 %v379, %v565
      %v567 = vpop.f32.mrb[0].mxu0
      %v568 = vadd.f32 %v383, %v567
      %569 = vmatprep.mubr.bf16.mxu0 0
      %570 = vmatmul.mubr.bf16.gmra.mrb[0].mxu0 %v459
      %v571 = vpop.f32.mrb[0].mxu0
      %v572 = vadd.f32 %v379, %v571
      %v573 = vpop.f32.mrb[0].mxu0
      %v574 = vadd.f32 %v383, %v573
      %v575 = vpop.f32.mrb[0].mxu0
      %v576 = vadd.f32 %v379, %v575
      %v577 = vpop.f32.mrb[0].mxu0
      %v578 = vadd.f32 %v383, %v577
      %579 = vmatprep.mubr.bf16.mxu0 0
      %580 = vmatmul.mubr.bf16.gmra.mrb[0].mxu0 %v462
      %v581 = vpop.f32.mrb[0].mxu0
      %v582 = vadd.f32 %v379, %v581
      %v583 = vpop.f32.mrb[0].mxu0
      %v584 = vadd.f32 %v383, %v583
      %v585 = vpop.f32.mrb[0].mxu0
      %v586 = vadd.f32 %v379, %v585
      %v587 = vpop.f32.mrb[0].mxu0
      %v588 = vadd.f32 %v383, %v587
      %589 = vmatprep.mubr.bf16.mxu0 0
      %590 = vmatmul.mubr.bf16.gmra.mrb[0].mxu0 %v465
      %v591 = vpop.f32.mrb[0].mxu0
      %v592 = vadd.f32 %v379, %v591
      %v593 = vpop.f32.mrb[0].mxu0
      %v594 = vadd.f32 %v383, %v593
      %v595 = vpop.f32.mrb[0].mxu0
      %v596 = vpop.f32.mrb[0].mxu0
      %597 = vdwg.mxu0
      %598 = vmatprep.subr.bf16.mxu0 %v423
      %599 = vmatpush1.bf16.msra.mxu0 %v422
      %600 = vmatprep.subr.bf16.mxu0 %v427
      %601 = vmatpush1.bf16.msra.mxu0 %v426
      %602 = vmatprep.subr.bf16.mxu0 0
      %603 = vmatpush1.bf16.msra.mxu0 0
      %604 = vmatprep.subr.bf16.mxu0 0
      %605 = vmatpush1.bf16.msra.mxu0 0
      %606 = vmatprep.subr.bf16.mxu0 0
      %607 = vmatpush1.bf16.msra.mxu0 0
      %608 = vmatprep.subr.bf16.mxu0 0
      %609 = vmatpush1.bf16.msra.mxu0 0
      %610 = vmatprep.subr.bf16.mxu0 0
      %611 = vmatpush1.bf16.msra.mxu0 0
      %612 = vmatprep.subr.bf16.mxu0 0
      %613 = vmatpush1.bf16.msra.mxu0 0
      %614 = vmatprep.subr.bf16.mxu0 0
      %615 = vmatpush1.bf16.msra.mxu0 0
      %616 = vmatprep.subr.bf16.mxu0 0
      %617 = vmatpush1.bf16.msra.mxu0 0
      %618 = vmatprep.subr.bf16.mxu0 0
      %619 = vmatpush1.bf16.msra.mxu0 0
      %620 = vmatprep.subr.bf16.mxu0 0
      %621 = vmatpush1.bf16.msra.mxu0 0
      %622 = vmatprep.subr.bf16.mxu0 0
      %623 = vmatpush1.bf16.msra.mxu0 0
      %624 = vmatprep.subr.bf16.mxu0 0
      %625 = vmatpush1.bf16.msra.mxu0 0
      %626 = vmatprep.subr.bf16.mxu0 0
      %627 = vmatpush1.bf16.msra.mxu0 0
      %628 = vmatprep.subr.bf16.mxu0 0
      %629 = vmatpush1.bf16.msra.mxu0 0
      %630 = vmatprep.mubr.bf16.mxu0 0
      %631 = vmatmul.mubr.bf16.gmra.mrb[0].mxu0 %v438
      %v632 = vpop.f32.mrb[0].mxu0
      %v633 = vadd.f32 %v387, %v632
      %v634 = vpop.f32.mrb[0].mxu0
      %v635 = vadd.f32 %v391, %v634
      %v636 = vpop.f32.mrb[0].mxu0
      %v637 = vadd.f32 %v387, %v636
      %v638 = vpop.f32.mrb[0].mxu0
      %v639 = vadd.f32 %v391, %v638
      %640 = vmatprep.mubr.bf16.mxu0 0
      %641 = vmatmul.mubr.bf16.gmra.mrb[0].mxu0 %v441
      %v642 = vpop.f32.mrb[0].mxu0
      %v643 = vadd.f32 %v387, %v642
      %v644 = vpop.f32.mrb[0].mxu0
      %v645 = vadd.f32 %v391, %v644
      %v646 = vpop.f32.mrb[0].mxu0
      %v647 = vadd.f32 %v387, %v646
      %v648 = vpop.f32.mrb[0].mxu0
      %v649 = vadd.f32 %v391, %v648
      %650 = vmatprep.mubr.bf16.mxu0 0
      %651 = vmatmul.mubr.bf16.gmra.mrb[0].mxu0 %v444
      %v652 = vpop.f32.mrb[0].mxu0
      %v653 = vadd.f32 %v387, %v652
      %v654 = vpop.f32.mrb[0].mxu0
      %v655 = vadd.f32 %v391, %v654
      %v656 = vpop.f32.mrb[0].mxu0
      %v657 = vadd.f32 %v387, %v656
      %v658 = vpop.f32.mrb[0].mxu0
      %v659 = vadd.f32 %v391, %v658
      %660 = vmatprep.mubr.bf16.mxu0 0
      %661 = vmatmul.mubr.bf16.gmra.mrb[0].mxu0 %v447
      %v662 = vpop.f32.mrb[0].mxu0
      %v663 = vadd.f32 %v387, %v662
      %v664 = vpop.f32.mrb[0].mxu0
      %v665 = vadd.f32 %v391, %v664
      %v666 = vpop.f32.mrb[0].mxu0
      %v667 = vadd.f32 %v387, %v666
      %v668 = vpop.f32.mrb[0].mxu0
      %v669 = vadd.f32 %v391, %v668
      %670 = vmatprep.mubr.bf16.mxu0 0
      %671 = vmatmul.mubr.bf16.gmra.mrb[0].mxu0 %v450
      %v672 = vpop.f32.mrb[0].mxu0
      %v673 = vadd.f32 %v387, %v672
      %v674 = vpop.f32.mrb[0].mxu0
      %v675 = vadd.f32 %v391, %v674
      %v676 = vpop.f32.mrb[0].mxu0
      %v677 = vadd.f32 %v387, %v676
      %v678 = vpop.f32.mrb[0].mxu0
      %v679 = vadd.f32 %v391, %v678
      %680 = vmatprep.mubr.bf16.mxu0 0
      %681 = vmatmul.mubr.bf16.gmra.mrb[0].mxu0 %v453
      %v682 = vpop.f32.mrb[0].mxu0
      %v683 = vadd.f32 %v387, %v682
      %v684 = vpop.f32.mrb[0].mxu0
      %v685 = vadd.f32 %v391, %v684
      %v686 = vpop.f32.mrb[0].mxu0
      %v687 = vadd.f32 %v387, %v686
      %v688 = vpop.f32.mrb[0].mxu0
      %v689 = vadd.f32 %v391, %v688
      %690 = vmatprep.mubr.bf16.mxu0 0
      %691 = vmatmul.mubr.bf16.gmra.mrb[0].mxu0 %v456
      %v692 = vpop.f32.mrb[0].mxu0
      %v693 = vadd.f32 %v387, %v692
      %v694 = vpop.f32.mrb[0].mxu0
      %v695 = vadd.f32 %v391, %v694
      %v696 = vpop.f32.mrb[0].mxu0
      %v697 = vadd.f32 %v387, %v696
      %v698 = vpop.f32.mrb[0].mxu0
      %v699 = vadd.f32 %v391, %v698
      %700 = vmatprep.mubr.bf16.mxu0 0
      %701 = vmatmul.mubr.bf16.gmra.mrb[0].mxu0 %v459
      %v702 = vpop.f32.mrb[0].mxu0
      %v703 = vadd.f32 %v387, %v702
      %v704 = vpop.f32.mrb[0].mxu0
      %v705 = vadd.f32 %v391, %v704
      %v706 = vpop.f32.mrb[0].mxu0
      %v707 = vadd.f32 %v387, %v706
      %v708 = vpop.f32.mrb[0].mxu0
      %v709 = vadd.f32 %v391, %v708
      %710 = vmatprep.mubr.bf16.mxu0 0
      %711 = vmatmul.mubr.bf16.gmra.mrb[0].mxu0 %v462
      %v712 = vpop.f32.mrb[0].mxu0
      %v713 = vadd.f32 %v387, %v712
      %v714 = vpop.f32.mrb[0].mxu0
      %v715 = vadd.f32 %v391, %v714
      %v716 = vpop.f32.mrb[0].mxu0
      %v717 = vadd.f32 %v387, %v716
      %v718 = vpop.f32.mrb[0].mxu0
      %v719 = vadd.f32 %v391, %v718
      %720 = vmatprep.mubr.bf16.mxu0 0
      %721 = vmatmul.mubr.bf16.gmra.mrb[0].mxu0 %v465
      %v722 = vpop.f32.mrb[0].mxu0
      %v723 = vadd.f32 %v387, %v722
      %v724 = vpop.f32.mrb[0].mxu0
      %v725 = vadd.f32 %v391, %v724
      %v726 = vpop.f32.mrb[0].mxu0
      %v727 = vpop.f32.mrb[0].mxu0
      %728 = vdwg.mxu0
      %v729 = vmax.f32 %v502, 0.0
      %v730 = vmax.f32 %v504, 0.0
      %v731 = vmax.f32 %v633, 0.0
      %v732 = vmax.f32 %v635, 0.0
      %v733 = vmax.f32 %v506, 0.0
      %v734 = vmax.f32 %v508, 0.0
      %v735 = vmax.f32 %v637, 0.0
      %v736 = vmax.f32 %v639, 0.0
      %v737 = vmax.f32 %v512, 0.0
      %v738 = vmax.f32 %v514, 0.0
      %v739 = vmax.f32 %v643, 0.0
      %v740 = vmax.f32 %v645, 0.0
      %v741 = vmax.f32 %v516, 0.0
      %v742 = vmax.f32 %v518, 0.0
      %v743 = vmax.f32 %v647, 0.0
      %v744 = vmax.f32 %v649, 0.0
      %v745 = vmax.f32 %v522, 0.0
      %v746 = vmax.f32 %v524, 0.0
      %v747 = vmax.f32 %v653, 0.0
      %v748 = vmax.f32 %v655, 0.0
      %v749 = vmax.f32 %v526, 0.0
      %v750 = vmax.f32 %v528, 0.0
      %v751 = vmax.f32 %v657, 0.0
      %v752 = vmax.f32 %v659, 0.0
      %v753 = vmax.f32 %v532, 0.0
      %v754 = vmax.f32 %v534, 0.0
      %v755 = vmax.f32 %v663, 0.0
      %v756 = vmax.f32 %v665, 0.0
      %v757 = vmax.f32 %v536, 0.0
      %v758 = vmax.f32 %v538, 0.0
      %v759 = vmax.f32 %v667, 0.0
      %v760 = vmax.f32 %v669, 0.0
      %v761 = vmax.f32 %v542, 0.0
      %v762 = vmax.f32 %v544, 0.0
      %v763 = vmax.f32 %v673, 0.0
      %v764 = vmax.f32 %v675, 0.0
      %v765 = vmax.f32 %v546, 0.0
      %v766 = vmax.f32 %v548, 0.0
      %v767 = vmax.f32 %v677, 0.0
      %v768 = vmax.f32 %v679, 0.0
      %v769 = vmax.f32 %v552, 0.0
      %v770 = vmax.f32 %v554, 0.0
      %v771 = vmax.f32 %v683, 0.0
      %v772 = vmax.f32 %v685, 0.0
      %v773 = vmax.f32 %v556, 0.0
      %v774 = vmax.f32 %v558, 0.0
      %v775 = vmax.f32 %v687, 0.0
      %v776 = vmax.f32 %v689, 0.0
      %v777 = vmax.f32 %v562, 0.0
      %v778 = vmax.f32 %v564, 0.0
      %v779 = vmax.f32 %v693, 0.0
      %v780 = vmax.f32 %v695, 0.0
      %v781 = vmax.f32 %v566, 0.0
      %v782 = vmax.f32 %v568, 0.0
      %v783 = vmax.f32 %v697, 0.0
      %v784 = vmax.f32 %v699, 0.0
      %v785 = vmax.f32 %v572, 0.0
      %v786 = vmax.f32 %v574, 0.0
      %v787 = vmax.f32 %v703, 0.0
      %v788 = vmax.f32 %v705, 0.0
      %v789 = vmax.f32 %v576, 0.0
      %v790 = vmax.f32 %v578, 0.0
      %v791 = vmax.f32 %v707, 0.0
      %v792 = vmax.f32 %v709, 0.0
      %v793 = vmax.f32 %v582, 0.0
      %v794 = vmax.f32 %v584, 0.0
      %v795 = vmax.f32 %v713, 0.0
      %v796 = vmax.f32 %v715, 0.0
      %v797 = vmax.f32 %v586, 0.0
      %v798 = vmax.f32 %v588, 0.0
      %v799 = vmax.f32 %v717, 0.0
      %v800 = vmax.f32 %v719, 0.0
      %v801 = vmax.f32 %v592, 0.0
      %v802 = vmax.f32 %v594, 0.0
      %v803 = vmax.f32 %v723, 0.0
      %v804 = vmax.f32 %v725, 0.0
      %v805 = vpack.c.bf16 %v733, %v729
      %v806 = vpack.c.bf16 %v734, %v730
      %v807 = vpack.c.bf16 %v735, %v731
      %v808 = vpack.c.bf16 %v736, %v732
      %v809 = vpack.c.bf16 %v741, %v737
      %v810 = vpack.c.bf16 %v742, %v738
      %v811 = vpack.c.bf16 %v743, %v739
      %v812 = vpack.c.bf16 %v744, %v740
      %v813 = vpack.c.bf16 %v749, %v745
      %v814 = vpack.c.bf16 %v750, %v746
      %v815 = vpack.c.bf16 %v751, %v747
      %v816 = vpack.c.bf16 %v752, %v748
      %v817 = vpack.c.bf16 %v757, %v753
      %v818 = vpack.c.bf16 %v758, %v754
      %v819 = vpack.c.bf16 %v759, %v755
      %v820 = vpack.c.bf16 %v760, %v756
      %v821 = vpack.c.bf16 %v765, %v761
      %v822 = vpack.c.bf16 %v766, %v762
      %v823 = vpack.c.bf16 %v767, %v763
      %v824 = vpack.c.bf16 %v768, %v764
      %v825 = vpack.c.bf16 %v773, %v769
      %v826 = vpack.c.bf16 %v774, %v770
      %v827 = vpack.c.bf16 %v775, %v771
      %v828 = vpack.c.bf16 %v776, %v772
      %v829 = vpack.c.bf16 %v781, %v777
      %v830 = vpack.c.bf16 %v782, %v778
      %v831 = vpack.c.bf16 %v783, %v779
      %v832 = vpack.c.bf16 %v784, %v780
      %v833 = vpack.c.bf16 %v789, %v785
      %v834 = vpack.c.bf16 %v790, %v786
      %v835 = vpack.c.bf16 %v791, %v787
      %v836 = vpack.c.bf16 %v792, %v788
      %v837 = vpack.c.bf16 %v797, %v793
      %v838 = vpack.c.bf16 %v798, %v794
      %v839 = vpack.c.bf16 %v799, %v795
      %v840 = vpack.c.bf16 %v800, %v796
      %v841 = vpack.c.bf16 %v801, %v801
      %v842 = vpack.c.bf16 %v802, %v802
      %v843 = vpack.c.bf16 %v803, %v803
      %v844 = vpack.c.bf16 %v804, %v804
      %v845 = vld [vmem:[%s3] sm:$0xff]
      %v846 = vld [vmem:[%s3 + $0x8] sm:$0xff]
      %v847 = vld [vmem:[%s3 + $0x10] sm:$0xff]
      %v848 = vld [vmem:[%s3 + $0x18] sm:$0xff]
      %v849 = vld [vmem:[%s3 + $0x20] sm:$0xff]
      %v850 = vld [vmem:[%s3 + $0x28] sm:$0xff]
      %v851 = vld [vmem:[%s3 + $0x30] sm:$0xff]
      %v852 = vld [vmem:[%s3 + $0x38] sm:$0xff]
      %v853 = vld [vmem:[%s3 + $0x40] sm:$0xff]
      %v854 = vld [vmem:[%s3 + $0x48] sm:$0xff]
      %v855 = vld [vmem:[%s3 + $0x50] sm:$0xff]
      %v856 = vld [vmem:[%s3 + $0x58] sm:$0xff]
      %v857 = vld [vmem:[%s3 + $0x60] sm:$0xff]
      %v858 = vld [vmem:[%s3 + $0x68] sm:$0xff]
      %v859 = vld [vmem:[%s3 + $0x70] sm:$0xff]
      %v860 = vld [vmem:[%s3 + $0x78] sm:$0xff]
      %v861 = vld [vmem:[%s3 + $0x80] sm:$0xff]
      %v862 = vld [vmem:[%s3 + $0x88] sm:$0xff]
      %v863 = vld [vmem:[%s3 + $0x90] sm:$0xff]
      %v864 = vld [vmem:[%s3 + $0x98] sm:$0xff]
      %v865 = vld [vmem:[%s3 + $0xa0] sm:$0xff]
      %v866 = vld [vmem:[%s3 + $0xa8] sm:$0xff]
      %v867 = vld [vmem:[%s3 + $0xb0] sm:$0xff]
      %v868 = vld [vmem:[%s3 + $0xb8] sm:$0xff]
      %v869 = vld [vmem:[%s3 + $0xc0] sm:$0xff]
      %v870 = vld [vmem:[%s3 + $0xc8] sm:$0xff]
      %v871 = vld [vmem:[%s3 + $0xd0] sm:$0xff]
      %v872 = vld [vmem:[%s3 + $0xd8] sm:$0xff]
      %v873 = vld [vmem:[%s3 + $0xe0] sm:$0xff]
      %v874 = vld [vmem:[%s3 + $0xe8] sm:$0xff]
      %v875 = vld [vmem:[%s3 + $0xf0] sm:$0xff]
      %v876 = vld [vmem:[%s3 + $0xf8] sm:$0xff]
      %v877 = vld [vmem:[%s3 + $0x100] sm:$0xff]
      %v878 = vld [vmem:[%s3 + $0x108] sm:$0xff]
      %v879 = vld [vmem:[%s3 + $0x110] sm:$0xff]
      %v880 = vld [vmem:[%s3 + $0x118] sm:$0xff]
      %v881 = vld [vmem:[%s3 + $0x120] sm:$0xff]
      %v882 = vld [vmem:[%s3 + $0x128] sm:$0xff]
      %v883 = vld [vmem:[%s3 + $0x130] sm:$0xff]
      %v884 = vld [vmem:[%s3 + $0x138] sm:$0xff]
      %v885 = vld [vmem:[%s3 + $0x140] sm:$0xff]
      %v886 = vld [vmem:[%s3 + $0x148] sm:$0xff]
      %v887 = vld [vmem:[%s3 + $0x150] sm:$0xff]
      %v888 = vld [vmem:[%s3 + $0x158] sm:$0xff]
      %v889 = vld [vmem:[%s3 + $0x160] sm:$0xff]
      %v890 = vld [vmem:[%s3 + $0x168] sm:$0xff]
      %v891 = vld [vmem:[%s3 + $0x170] sm:$0xff]
      %v892 = vld [vmem:[%s3 + $0x178] sm:$0xff]
      %v893 = vld [vmem:[%s3 + $0x180] sm:$0xff]
      %v894 = vld [vmem:[%s3 + $0x188] sm:$0xff]
      %v895 = vld [vmem:[%s3 + $0x190] sm:$0xff]
      %v896 = vld [vmem:[%s3 + $0x198] sm:$0xff]
      %v897 = vld [vmem:[%s3 + $0x1a0] sm:$0xff]
      %v898 = vld [vmem:[%s3 + $0x1a8] sm:$0xff]
      %v899 = vld [vmem:[%s3 + $0x1b0] sm:$0xff]
      %v900 = vld [vmem:[%s3 + $0x1b8] sm:$0xff]
      %v901 = vld [vmem:[%s3 + $0x1c0] sm:$0xff]
      %v902 = vld [vmem:[%s3 + $0x1c8] sm:$0xff]
      %v903 = vld [vmem:[%s3 + $0x1d0] sm:$0xff]
      %v904 = vld [vmem:[%s3 + $0x1d8] sm:$0xff]
      %v905 = vld [vmem:[%s3 + $0x1e0] sm:$0xff]
      %v906 = vld [vmem:[%s3 + $0x1e8] sm:$0xff]
      %v907 = vld [vmem:[%s3 + $0x1f0] sm:$0xff]
      %v908 = vld [vmem:[%s3 + $0x1f8] sm:$0xff]
      %v909 = vld [vmem:[%s4] sm:$0x3]
      %v911 = vlaneseq
      %v912 = vshrl.u32 %v911, 7
      %v913 = vsub.s32 0, %v912
      %v914 = vrot.slane %v909, %v913
      %v915 = vlaneseq
      %v916 = vshrl.u32 %v915, 7
      %v917 = vsub.s32 1, %v916
      %v918 = vrot.slane %v909, %v917
      %v985 = vunpack.c.l.b16 %v845
      %v986 = vunpack.c.h.b16 %v845
      %v987 = vunpack.c.l.b16 %v846
      %v988 = vunpack.c.h.b16 %v846
      %v989 = vunpack.c.l.b16 %v847
      %v990 = vunpack.c.h.b16 %v847
      %v991 = vunpack.c.l.b16 %v848
      %v992 = vunpack.c.h.b16 %v848
      %v993 = vunpack.c.l.b16 %v849
      %v994 = vunpack.c.h.b16 %v849
      %v995 = vunpack.c.l.b16 %v850
      %v996 = vunpack.c.h.b16 %v850
      %v997 = vunpack.c.l.b16 %v851
      %v998 = vunpack.c.h.b16 %v851
      %v999 = vunpack.c.l.b16 %v852
      %v1000 = vunpack.c.h.b16 %v852
      %v1001 = vunpack.c.l.b16 %v853
      %v1002 = vunpack.c.h.b16 %v853
      %v1003 = vunpack.c.l.b16 %v854
      %v1004 = vunpack.c.h.b16 %v854
      %v1005 = vunpack.c.l.b16 %v855
      %v1006 = vunpack.c.h.b16 %v855
      %v1007 = vunpack.c.l.b16 %v856
      %v1008 = vunpack.c.h.b16 %v856
      %v1009 = vunpack.c.l.b16 %v857
      %v1010 = vunpack.c.h.b16 %v857
      %v1011 = vunpack.c.l.b16 %v858
      %v1012 = vunpack.c.h.b16 %v858
      %v1013 = vunpack.c.l.b16 %v859
      %v1014 = vunpack.c.h.b16 %v859
      %v1015 = vunpack.c.l.b16 %v860
      %v1016 = vunpack.c.h.b16 %v860
      %v1017 = vunpack.c.l.b16 %v861
      %v1018 = vunpack.c.h.b16 %v861
      %v1019 = vunpack.c.l.b16 %v862
      %v1020 = vunpack.c.h.b16 %v862
      %v1021 = vunpack.c.l.b16 %v863
      %v1022 = vunpack.c.h.b16 %v863
      %v1023 = vunpack.c.l.b16 %v864
      %v1024 = vunpack.c.h.b16 %v864
      %v1025 = vunpack.c.l.b16 %v865
      %v1026 = vunpack.c.h.b16 %v865
      %v1027 = vunpack.c.l.b16 %v866
      %v1028 = vunpack.c.h.b16 %v866
      %v1029 = vunpack.c.l.b16 %v867
      %v1030 = vunpack.c.h.b16 %v867
      %v1031 = vunpack.c.l.b16 %v868
      %v1032 = vunpack.c.h.b16 %v868
      %v1033 = vunpack.c.l.b16 %v869
      %v1034 = vunpack.c.h.b16 %v869
      %v1035 = vunpack.c.l.b16 %v870
      %v1036 = vunpack.c.h.b16 %v870
      %v1037 = vunpack.c.l.b16 %v871
      %v1038 = vunpack.c.h.b16 %v871
      %v1039 = vunpack.c.l.b16 %v872
      %v1040 = vunpack.c.h.b16 %v872
      %v1041 = vunpack.c.l.b16 %v873
      %v1042 = vunpack.c.h.b16 %v873
      %v1043 = vunpack.c.l.b16 %v874
      %v1044 = vunpack.c.h.b16 %v874
      %v1045 = vunpack.c.l.b16 %v875
      %v1046 = vunpack.c.h.b16 %v875
      %v1047 = vunpack.c.l.b16 %v876
      %v1048 = vunpack.c.h.b16 %v876
      %v1049 = vunpack.c.l.b16 %v877
      %v1050 = vunpack.c.h.b16 %v877
      %v1051 = vunpack.c.l.b16 %v878
      %v1052 = vunpack.c.h.b16 %v878
      %v1053 = vunpack.c.l.b16 %v879
      %v1054 = vunpack.c.h.b16 %v879
      %v1055 = vunpack.c.l.b16 %v880
      %v1056 = vunpack.c.h.b16 %v880
      %v1057 = vunpack.c.l.b16 %v881
      %v1058 = vunpack.c.h.b16 %v881
      %v1059 = vunpack.c.l.b16 %v882
      %v1060 = vunpack.c.h.b16 %v882
      %v1061 = vunpack.c.l.b16 %v883
      %v1062 = vunpack.c.h.b16 %v883
      %v1063 = vunpack.c.l.b16 %v884
      %v1064 = vunpack.c.h.b16 %v884
      %v1065 = vunpack.c.l.b16 %v885
      %v1066 = vunpack.c.h.b16 %v885
      %v1067 = vunpack.c.l.b16 %v886
      %v1068 = vunpack.c.h.b16 %v886
      %v1069 = vunpack.c.l.b16 %v887
      %v1070 = vunpack.c.h.b16 %v887
      %v1071 = vunpack.c.l.b16 %v888
      %v1072 = vunpack.c.h.b16 %v888
      %v1073 = vunpack.c.l.b16 %v889
      %v1074 = vunpack.c.h.b16 %v889
      %v1075 = vunpack.c.l.b16 %v890
      %v1076 = vunpack.c.h.b16 %v890
      %v1077 = vunpack.c.l.b16 %v891
      %v1078 = vunpack.c.h.b16 %v891
      %v1079 = vunpack.c.l.b16 %v892
      %v1080 = vunpack.c.h.b16 %v892
      %v1081 = vunpack.c.l.b16 %v893
      %v1082 = vunpack.c.h.b16 %v893
      %v1083 = vunpack.c.l.b16 %v894
      %v1084 = vunpack.c.h.b16 %v894
      %v1085 = vunpack.c.l.b16 %v895
      %v1086 = vunpack.c.h.b16 %v895
      %v1087 = vunpack.c.l.b16 %v896
      %v1088 = vunpack.c.h.b16 %v896
      %v1089 = vunpack.c.l.b16 %v897
      %v1090 = vunpack.c.h.b16 %v897
      %v1091 = vunpack.c.l.b16 %v898
      %v1092 = vunpack.c.h.b16 %v898
      %v1093 = vunpack.c.l.b16 %v899
      %v1094 = vunpack.c.h.b16 %v899
      %v1095 = vunpack.c.l.b16 %v900
      %v1096 = vunpack.c.h.b16 %v900
      %v1097 = vunpack.c.l.b16 %v901
      %v1098 = vunpack.c.h.b16 %v901
      %v1099 = vunpack.c.l.b16 %v902
      %v1100 = vunpack.c.h.b16 %v902
      %v1101 = vunpack.c.l.b16 %v903
      %v1102 = vunpack.c.h.b16 %v903
      %v1103 = vunpack.c.l.b16 %v904
      %v1104 = vunpack.c.h.b16 %v904
      %v1105 = vunpack.c.l.b16 %v905
      %v1106 = vunpack.c.h.b16 %v905
      %v1107 = vunpack.c.l.b16 %v906
      %v1108 = vunpack.c.h.b16 %v906
      %v1109 = vunpack.c.l.b16 %v907
      %v1110 = vunpack.c.h.b16 %v907
      %v1111 = vunpack.c.l.b16 %v908
      %v1112 = vunpack.c.h.b16 %v908
      %v1113 = vpack.c.b16 %v987, %v985
      %v1114 = vpack.c.b16 %v988, %v986
      %v1115 = vpack.c.b16 %v991, %v989
      %v1116 = vpack.c.b16 %v992, %v990
      %v1117 = vpack.c.b16 %v995, %v993
      %v1118 = vpack.c.b16 %v996, %v994
      %v1119 = vpack.c.b16 %v999, %v997
      %v1120 = vpack.c.b16 %v1000, %v998
      %v1121 = vpack.c.b16 %v1003, %v1001
      %v1122 = vpack.c.b16 %v1004, %v1002
      %v1123 = vpack.c.b16 %v1007, %v1005
      %v1124 = vpack.c.b16 %v1008, %v1006
      %v1125 = vpack.c.b16 %v1011, %v1009
      %v1126 = vpack.c.b16 %v1012, %v1010
      %v1127 = vpack.c.b16 %v1015, %v1013
      %v1128 = vpack.c.b16 %v1016, %v1014
      %v1129 = vpack.c.b16 %v1019, %v1017
      %v1130 = vpack.c.b16 %v1020, %v1018
      %v1131 = vpack.c.b16 %v1023, %v1021
      %v1132 = vpack.c.b16 %v1024, %v1022
      %v1133 = vpack.c.b16 %v1027, %v1025
      %v1134 = vpack.c.b16 %v1028, %v1026
      %v1135 = vpack.c.b16 %v1031, %v1029
      %v1136 = vpack.c.b16 %v1032, %v1030
      %v1137 = vpack.c.b16 %v1035, %v1033
      %v1138 = vpack.c.b16 %v1036, %v1034
      %v1139 = vpack.c.b16 %v1039, %v1037
      %v1140 = vpack.c.b16 %v1040, %v1038
      %v1141 = vpack.c.b16 %v1043, %v1041
      %v1142 = vpack.c.b16 %v1044, %v1042
      %v1143 = vpack.c.b16 %v1047, %v1045
      %v1144 = vpack.c.b16 %v1048, %v1046
      %v1145 = vpack.c.b16 %v1051, %v1049
      %v1146 = vpack.c.b16 %v1052, %v1050
      %v1147 = vpack.c.b16 %v1055, %v1053
      %v1148 = vpack.c.b16 %v1056, %v1054
      %v1149 = vpack.c.b16 %v1059, %v1057
      %v1150 = vpack.c.b16 %v1060, %v1058
      %v1151 = vpack.c.b16 %v1063, %v1061
      %v1152 = vpack.c.b16 %v1064, %v1062
      %v1153 = vpack.c.b16 %v1067, %v1065
      %v1154 = vpack.c.b16 %v1068, %v1066
      %v1155 = vpack.c.b16 %v1071, %v1069
      %v1156 = vpack.c.b16 %v1072, %v1070
      %v1157 = vpack.c.b16 %v1075, %v1073
      %v1158 = vpack.c.b16 %v1076, %v1074
      %v1159 = vpack.c.b16 %v1079, %v1077
      %v1160 = vpack.c.b16 %v1080, %v1078
      %v1161 = vpack.c.b16 %v1083, %v1081
      %v1162 = vpack.c.b16 %v1084, %v1082
      %v1163 = vpack.c.b16 %v1087, %v1085
      %v1164 = vpack.c.b16 %v1088, %v1086
      %v1165 = vpack.c.b16 %v1091, %v1089
      %v1166 = vpack.c.b16 %v1092, %v1090
      %v1167 = vpack.c.b16 %v1095, %v1093
      %v1168 = vpack.c.b16 %v1096, %v1094
      %v1169 = vpack.c.b16 %v1099, %v1097
      %v1170 = vpack.c.b16 %v1100, %v1098
      %v1171 = vpack.c.b16 %v1103, %v1101
      %v1172 = vpack.c.b16 %v1104, %v1102
      %v1173 = vpack.c.b16 %v1107, %v1105
      %v1174 = vpack.c.b16 %v1108, %v1106
      %v1175 = vpack.c.b16 %v1111, %v1109
      %v1176 = vpack.c.b16 %v1112, %v1110
      %1241 = vmatprep.subr.bf16.mxu0 %v1114
      %1242 = vmatpush1.bf16.msra.mxu0 %v1113
      %1243 = vmatprep.subr.bf16.mxu0 %v1116
      %1244 = vmatpush1.bf16.msra.mxu0 %v1115
      %1245 = vmatprep.subr.bf16.mxu0 %v1118
      %1246 = vmatpush1.bf16.msra.mxu0 %v1117
      %1247 = vmatprep.subr.bf16.mxu0 %v1120
      %1248 = vmatpush1.bf16.msra.mxu0 %v1119
      %1249 = vmatprep.subr.bf16.mxu0 %v1122
      %1250 = vmatpush1.bf16.msra.mxu0 %v1121
      %1251 = vmatprep.subr.bf16.mxu0 %v1124
      %1252 = vmatpush1.bf16.msra.mxu0 %v1123
      %1253 = vmatprep.subr.bf16.mxu0 %v1126
      %1254 = vmatpush1.bf16.msra.mxu0 %v1125
      %1255 = vmatprep.subr.bf16.mxu0 %v1128
      %1256 = vmatpush1.bf16.msra.mxu0 %v1127
      %1257 = vmatprep.subr.bf16.mxu0 %v1130
      %1258 = vmatpush1.bf16.msra.mxu0 %v1129
      %1259 = vmatprep.subr.bf16.mxu0 %v1132
      %1260 = vmatpush1.bf16.msra.mxu0 %v1131
      %1261 = vmatprep.subr.bf16.mxu0 %v1134
      %1262 = vmatpush1.bf16.msra.mxu0 %v1133
      %1263 = vmatprep.subr.bf16.mxu0 %v1136
      %1264 = vmatpush1.bf16.msra.mxu0 %v1135
      %1265 = vmatprep.subr.bf16.mxu0 %v1138
      %1266 = vmatpush1.bf16.msra.mxu0 %v1137
      %1267 = vmatprep.subr.bf16.mxu0 %v1140
      %1268 = vmatpush1.bf16.msra.mxu0 %v1139
      %1269 = vmatprep.subr.bf16.mxu0 %v1142
      %1270 = vmatpush1.bf16.msra.mxu0 %v1141
      %1271 = vmatprep.subr.bf16.mxu0 %v1144
      %1272 = vmatpush1.bf16.msra.mxu0 %v1143
      %1273 = vmatprep.mubr.bf16.mxu0 %v806
      %1274 = vmatmul.mubr.bf16.gmra.mrb[0].mxu0 %v805
      %v1275 = vpop.f32.mrb[0].mxu0
      %v1276 = vadd.f32 %v914, %v1275
      %v1277 = vpop.f32.mrb[0].mxu0
      %v1278 = vadd.f32 %v918, %v1277
      %v1279 = vpop.f32.mrb[0].mxu0
      %v1280 = vadd.f32 %v914, %v1279
      %v1281 = vpop.f32.mrb[0].mxu0
      %v1282 = vadd.f32 %v918, %v1281
      %1283 = vmatprep.mubr.bf16.mxu0 %v810
      %1284 = vmatmul.mubr.bf16.gmra.mrb[0].mxu0 %v809
      %v1285 = vpop.f32.mrb[0].mxu0
      %v1286 = vadd.f32 %v914, %v1285
      %v1287 = vpop.f32.mrb[0].mxu0
      %v1288 = vadd.f32 %v918, %v1287
      %v1289 = vpop.f32.mrb[0].mxu0
      %v1290 = vadd.f32 %v914, %v1289
      %v1291 = vpop.f32.mrb[0].mxu0
      %v1292 = vadd.f32 %v918, %v1291
      %1293 = vmatprep.mubr.bf16.mxu0 %v814
      %1294 = vmatmul.mubr.bf16.gmra.mrb[0].mxu0 %v813
      %v1295 = vpop.f32.mrb[0].mxu0
      %v1296 = vadd.f32 %v914, %v1295
      %v1297 = vpop.f32.mrb[0].mxu0
      %v1298 = vadd.f32 %v918, %v1297
      %v1299 = vpop.f32.mrb[0].mxu0
      %v1300 = vadd.f32 %v914, %v1299
      %v1301 = vpop.f32.mrb[0].mxu0
      %v1302 = vadd.f32 %v918, %v1301
      %1303 = vmatprep.mubr.bf16.mxu0 %v818
      %1304 = vmatmul.mubr.bf16.gmra.mrb[0].mxu0 %v817
      %v1305 = vpop.f32.mrb[0].mxu0
      %v1306 = vadd.f32 %v914, %v1305
      %v1307 = vpop.f32.mrb[0].mxu0
      %v1308 = vadd.f32 %v918, %v1307
      %v1309 = vpop.f32.mrb[0].mxu0
      %v1310 = vadd.f32 %v914, %v1309
      %v1311 = vpop.f32.mrb[0].mxu0
      %v1312 = vadd.f32 %v918, %v1311
      %1313 = vmatprep.mubr.bf16.mxu0 %v822
      %1314 = vmatmul.mubr.bf16.gmra.mrb[0].mxu0 %v821
      %v1315 = vpop.f32.mrb[0].mxu0
      %v1316 = vadd.f32 %v914, %v1315
      %v1317 = vpop.f32.mrb[0].mxu0
      %v1318 = vadd.f32 %v918, %v1317
      %v1319 = vpop.f32.mrb[0].mxu0
      %v1320 = vadd.f32 %v914, %v1319
      %v1321 = vpop.f32.mrb[0].mxu0
      %v1322 = vadd.f32 %v918, %v1321
      %1323 = vmatprep.mubr.bf16.mxu0 %v826
      %1324 = vmatmul.mubr.bf16.gmra.mrb[0].mxu0 %v825
      %v1325 = vpop.f32.mrb[0].mxu0
      %v1326 = vadd.f32 %v914, %v1325
      %v1327 = vpop.f32.mrb[0].mxu0
      %v1328 = vadd.f32 %v918, %v1327
      %v1329 = vpop.f32.mrb[0].mxu0
      %v1330 = vadd.f32 %v914, %v1329
      %v1331 = vpop.f32.mrb[0].mxu0
      %v1332 = vadd.f32 %v918, %v1331
      %1333 = vmatprep.mubr.bf16.mxu0 %v830
      %1334 = vmatmul.mubr.bf16.gmra.mrb[0].mxu0 %v829
      %v1335 = vpop.f32.mrb[0].mxu0
      %v1336 = vadd.f32 %v914, %v1335
      %v1337 = vpop.f32.mrb[0].mxu0
      %v1338 = vadd.f32 %v918, %v1337
      %v1339 = vpop.f32.mrb[0].mxu0
      %v1340 = vadd.f32 %v914, %v1339
      %v1341 = vpop.f32.mrb[0].mxu0
      %v1342 = vadd.f32 %v918, %v1341
      %1343 = vmatprep.mubr.bf16.mxu0 %v834
      %1344 = vmatmul.mubr.bf16.gmra.mrb[0].mxu0 %v833
      %v1345 = vpop.f32.mrb[0].mxu0
      %v1346 = vadd.f32 %v914, %v1345
      %v1347 = vpop.f32.mrb[0].mxu0
      %v1348 = vadd.f32 %v918, %v1347
      %v1349 = vpop.f32.mrb[0].mxu0
      %v1350 = vadd.f32 %v914, %v1349
      %v1351 = vpop.f32.mrb[0].mxu0
      %v1352 = vadd.f32 %v918, %v1351
      %1353 = vmatprep.mubr.bf16.mxu0 %v838
      %1354 = vmatmul.mubr.bf16.gmra.mrb[0].mxu0 %v837
      %v1355 = vpop.f32.mrb[0].mxu0
      %v1356 = vadd.f32 %v914, %v1355
      %v1357 = vpop.f32.mrb[0].mxu0
      %v1358 = vadd.f32 %v918, %v1357
      %v1359 = vpop.f32.mrb[0].mxu0
      %v1360 = vadd.f32 %v914, %v1359
      %v1361 = vpop.f32.mrb[0].mxu0
      %v1362 = vadd.f32 %v918, %v1361
      %1363 = vmatprep.mubr.bf16.mxu0 %v842
      %1364 = vmatmul.mubr.bf16.gmra.mrb[0].mxu0 %v841
      %v1365 = vpop.f32.mrb[0].mxu0
      %v1366 = vadd.f32 %v914, %v1365
      %v1367 = vpop.f32.mrb[0].mxu0
      %v1368 = vadd.f32 %v918, %v1367
      %v1369 = vpop.f32.mrb[0].mxu0
      %v1370 = vpop.f32.mrb[0].mxu0
      %1371 = vdwg.mxu0
      %1372 = vmatprep.subr.bf16.mxu0 %v1146
      %1373 = vmatpush1.bf16.msra.mxu0 %v1145
      %1374 = vmatprep.subr.bf16.mxu0 %v1148
      %1375 = vmatpush1.bf16.msra.mxu0 %v1147
      %1376 = vmatprep.subr.bf16.mxu0 %v1150
      %1377 = vmatpush1.bf16.msra.mxu0 %v1149
      %1378 = vmatprep.subr.bf16.mxu0 %v1152
      %1379 = vmatpush1.bf16.msra.mxu0 %v1151
      %1380 = vmatprep.subr.bf16.mxu0 %v1154
      %1381 = vmatpush1.bf16.msra.mxu0 %v1153
      %1382 = vmatprep.subr.bf16.mxu0 %v1156
      %1383 = vmatpush1.bf16.msra.mxu0 %v1155
      %1384 = vmatprep.subr.bf16.mxu0 %v1158
      %1385 = vmatpush1.bf16.msra.mxu0 %v1157
      %1386 = vmatprep.subr.bf16.mxu0 %v1160
      %1387 = vmatpush1.bf16.msra.mxu0 %v1159
      %1388 = vmatprep.subr.bf16.mxu0 %v1162
      %1389 = vmatpush1.bf16.msra.mxu0 %v1161
      %1390 = vmatprep.subr.bf16.mxu0 %v1164
      %1391 = vmatpush1.bf16.msra.mxu0 %v1163
      %1392 = vmatprep.subr.bf16.mxu0 %v1166
      %1393 = vmatpush1.bf16.msra.mxu0 %v1165
      %1394 = vmatprep.subr.bf16.mxu0 %v1168
      %1395 = vmatpush1.bf16.msra.mxu0 %v1167
      %1396 = vmatprep.subr.bf16.mxu0 %v1170
      %1397 = vmatpush1.bf16.msra.mxu0 %v1169
      %1398 = vmatprep.subr.bf16.mxu0 %v1172
      %1399 = vmatpush1.bf16.msra.mxu0 %v1171
      %1400 = vmatprep.subr.bf16.mxu0 %v1174
      %1401 = vmatpush1.bf16.msra.mxu0 %v1173
      %1402 = vmatprep.subr.bf16.mxu0 %v1176
      %1403 = vmatpush1.bf16.msra.mxu0 %v1175
      %1404 = vmatprep.mubr.bf16.mxu0 %v808
      %1405 = vmatmul.mubr.bf16.gmra.mrb[0].mxu0 %v807
      %v1406 = vpop.f32.mrb[0].mxu0
      %v1407 = vadd.f32 %v1276, %v1406
      %v1408 = vpop.f32.mrb[0].mxu0
      %v1409 = vadd.f32 %v1278, %v1408
      %v1410 = vpop.f32.mrb[0].mxu0
      %v1411 = vadd.f32 %v1280, %v1410
      %v1412 = vpop.f32.mrb[0].mxu0
      %v1413 = vadd.f32 %v1282, %v1412
      %1414 = vmatprep.mubr.bf16.mxu0 %v812
      %1415 = vmatmul.mubr.bf16.gmra.mrb[0].mxu0 %v811
      %v1416 = vpop.f32.mrb[0].mxu0
      %v1417 = vadd.f32 %v1286, %v1416
      %v1418 = vpop.f32.mrb[0].mxu0
      %v1419 = vadd.f32 %v1288, %v1418
      %v1420 = vpop.f32.mrb[0].mxu0
      %v1421 = vadd.f32 %v1290, %v1420
      %v1422 = vpop.f32.mrb[0].mxu0
      %v1423 = vadd.f32 %v1292, %v1422
      %1424 = vmatprep.mubr.bf16.mxu0 %v816
      %1425 = vmatmul.mubr.bf16.gmra.mrb[0].mxu0 %v815
      %v1426 = vpop.f32.mrb[0].mxu0
      %v1427 = vadd.f32 %v1296, %v1426
      %v1428 = vpop.f32.mrb[0].mxu0
      %v1429 = vadd.f32 %v1298, %v1428
      %v1430 = vpop.f32.mrb[0].mxu0
      %v1431 = vadd.f32 %v1300, %v1430
      %v1432 = vpop.f32.mrb[0].mxu0
      %v1433 = vadd.f32 %v1302, %v1432
      %1434 = vmatprep.mubr.bf16.mxu0 %v820
      %1435 = vmatmul.mubr.bf16.gmra.mrb[0].mxu0 %v819
      %v1436 = vpop.f32.mrb[0].mxu0
      %v1437 = vadd.f32 %v1306, %v1436
      %v1438 = vpop.f32.mrb[0].mxu0
      %v1439 = vadd.f32 %v1308, %v1438
      %v1440 = vpop.f32.mrb[0].mxu0
      %v1441 = vadd.f32 %v1310, %v1440
      %v1442 = vpop.f32.mrb[0].mxu0
      %v1443 = vadd.f32 %v1312, %v1442
      %1444 = vmatprep.mubr.bf16.mxu0 %v824
      %1445 = vmatmul.mubr.bf16.gmra.mrb[0].mxu0 %v823
      %v1446 = vpop.f32.mrb[0].mxu0
      %v1447 = vadd.f32 %v1316, %v1446
      %v1448 = vpop.f32.mrb[0].mxu0
      %v1449 = vadd.f32 %v1318, %v1448
      %v1450 = vpop.f32.mrb[0].mxu0
      %v1451 = vadd.f32 %v1320, %v1450
      %v1452 = vpop.f32.mrb[0].mxu0
      %v1453 = vadd.f32 %v1322, %v1452
      %1454 = vmatprep.mubr.bf16.mxu0 %v828
      %1455 = vmatmul.mubr.bf16.gmra.mrb[0].mxu0 %v827
      %v1456 = vpop.f32.mrb[0].mxu0
      %v1457 = vadd.f32 %v1326, %v1456
      %v1458 = vpop.f32.mrb[0].mxu0
      %v1459 = vadd.f32 %v1328, %v1458
      %v1460 = vpop.f32.mrb[0].mxu0
      %v1461 = vadd.f32 %v1330, %v1460
      %v1462 = vpop.f32.mrb[0].mxu0
      %v1463 = vadd.f32 %v1332, %v1462
      %1464 = vmatprep.mubr.bf16.mxu0 %v832
      %1465 = vmatmul.mubr.bf16.gmra.mrb[0].mxu0 %v831
      %v1466 = vpop.f32.mrb[0].mxu0
      %v1467 = vadd.f32 %v1336, %v1466
      %v1468 = vpop.f32.mrb[0].mxu0
      %v1469 = vadd.f32 %v1338, %v1468
      %v1470 = vpop.f32.mrb[0].mxu0
      %v1471 = vadd.f32 %v1340, %v1470
      %v1472 = vpop.f32.mrb[0].mxu0
      %v1473 = vadd.f32 %v1342, %v1472
      %1474 = vmatprep.mubr.bf16.mxu0 %v836
      %1475 = vmatmul.mubr.bf16.gmra.mrb[0].mxu0 %v835
      %v1476 = vpop.f32.mrb[0].mxu0
      %v1477 = vadd.f32 %v1346, %v1476
      %v1478 = vpop.f32.mrb[0].mxu0
      %v1479 = vadd.f32 %v1348, %v1478
      %v1480 = vpop.f32.mrb[0].mxu0
      %v1481 = vadd.f32 %v1350, %v1480
      %v1482 = vpop.f32.mrb[0].mxu0
      %v1483 = vadd.f32 %v1352, %v1482
      %1484 = vmatprep.mubr.bf16.mxu0 %v840
      %1485 = vmatmul.mubr.bf16.gmra.mrb[0].mxu0 %v839
      %v1486 = vpop.f32.mrb[0].mxu0
      %v1487 = vadd.f32 %v1356, %v1486
      %v1488 = vpop.f32.mrb[0].mxu0
      %v1489 = vadd.f32 %v1358, %v1488
      %v1490 = vpop.f32.mrb[0].mxu0
      %v1491 = vadd.f32 %v1360, %v1490
      %v1492 = vpop.f32.mrb[0].mxu0
      %v1493 = vadd.f32 %v1362, %v1492
      %1494 = vmatprep.mubr.bf16.mxu0 %v844
      %1495 = vmatmul.mubr.bf16.gmra.mrb[0].mxu0 %v843
      %v1496 = vpop.f32.mrb[0].mxu0
      %v1497 = vadd.f32 %v1366, %v1496
      %v1498 = vpop.f32.mrb[0].mxu0
      %v1499 = vadd.f32 %v1368, %v1498
      %v1500 = vpop.f32.mrb[0].mxu0
      %v1501 = vpop.f32.mrb[0].mxu0
      %1502 = vdwg.mxu0
      %v1503 = vmax.f32 %v1407, 0.0
      %v1504 = vmax.f32 %v1409, 0.0
      %v1505 = vmax.f32 %v1411, 0.0
      %v1506 = vmax.f32 %v1413, 0.0
      %v1507 = vmax.f32 %v1417, 0.0
      %v1508 = vmax.f32 %v1419, 0.0
      %v1509 = vmax.f32 %v1421, 0.0
      %v1510 = vmax.f32 %v1423, 0.0
      %v1511 = vmax.f32 %v1427, 0.0
      %v1512 = vmax.f32 %v1429, 0.0
      %v1513 = vmax.f32 %v1431, 0.0
      %v1514 = vmax.f32 %v1433, 0.0
      %v1515 = vmax.f32 %v1437, 0.0
      %v1516 = vmax.f32 %v1439, 0.0
      %v1517 = vmax.f32 %v1441, 0.0
      %v1518 = vmax.f32 %v1443, 0.0
      %v1519 = vmax.f32 %v1447, 0.0
      %v1520 = vmax.f32 %v1449, 0.0
      %v1521 = vmax.f32 %v1451, 0.0
      %v1522 = vmax.f32 %v1453, 0.0
      %v1523 = vmax.f32 %v1457, 0.0
      %v1524 = vmax.f32 %v1459, 0.0
      %v1525 = vmax.f32 %v1461, 0.0
      %v1526 = vmax.f32 %v1463, 0.0
      %v1527 = vmax.f32 %v1467, 0.0
      %v1528 = vmax.f32 %v1469, 0.0
      %v1529 = vmax.f32 %v1471, 0.0
      %v1530 = vmax.f32 %v1473, 0.0
      %v1531 = vmax.f32 %v1477, 0.0
      %v1532 = vmax.f32 %v1479, 0.0
      %v1533 = vmax.f32 %v1481, 0.0
      %v1534 = vmax.f32 %v1483, 0.0
      %v1535 = vmax.f32 %v1487, 0.0
      %v1536 = vmax.f32 %v1489, 0.0
      %v1537 = vmax.f32 %v1491, 0.0
      %v1538 = vmax.f32 %v1493, 0.0
      %v1539 = vmax.f32 %v1497, 0.0
      %v1540 = vmax.f32 %v1499, 0.0
      %v1541 = vpack.c.bf16 %v1505, %v1503
      %v1542 = vpack.c.bf16 %v1506, %v1504
      %v1543 = vpack.c.bf16 %v1509, %v1507
      %v1544 = vpack.c.bf16 %v1510, %v1508
      %v1545 = vpack.c.bf16 %v1513, %v1511
      %v1546 = vpack.c.bf16 %v1514, %v1512
      %v1547 = vpack.c.bf16 %v1517, %v1515
      %v1548 = vpack.c.bf16 %v1518, %v1516
      %v1549 = vpack.c.bf16 %v1521, %v1519
      %v1550 = vpack.c.bf16 %v1522, %v1520
      %v1551 = vpack.c.bf16 %v1525, %v1523
      %v1552 = vpack.c.bf16 %v1526, %v1524
      %v1553 = vpack.c.bf16 %v1529, %v1527
      %v1554 = vpack.c.bf16 %v1530, %v1528
      %v1555 = vpack.c.bf16 %v1533, %v1531
      %v1556 = vpack.c.bf16 %v1534, %v1532
      %v1557 = vpack.c.bf16 %v1537, %v1535
      %v1558 = vpack.c.bf16 %v1538, %v1536
      %v1559 = vpack.c.bf16 %v1539, %v1539
      %v1560 = vpack.c.bf16 %v1540, %v1540
      %v1561 = vld [vmem:[%s5] sm:$0xf]
      %v1562 = vld [vmem:[%s5 + $0x4] sm:$0xf]
      %v1563 = vld [vmem:[%s5 + $0x8] sm:$0xf]
      %v1564 = vld [vmem:[%s5 + $0xc] sm:$0xf]
      %v1565 = vld [vmem:[%s5 + $0x10] sm:$0xf]
      %v1566 = vld [vmem:[%s5 + $0x14] sm:$0xf]
      %v1567 = vld [vmem:[%s5 + $0x18] sm:$0xf]
      %v1568 = vld [vmem:[%s5 + $0x1c] sm:$0xf]
      %v1569 = vld [vmem:[%s5 + $0x20] sm:$0xf]
      %v1570 = vld [vmem:[%s5 + $0x24] sm:$0xf]
      %v1571 = vld [vmem:[%s5 + $0x28] sm:$0xf]
      %v1572 = vld [vmem:[%s5 + $0x2c] sm:$0xf]
      %v1573 = vld [vmem:[%s5 + $0x30] sm:$0xf]
      %v1574 = vld [vmem:[%s5 + $0x34] sm:$0xf]
      %v1575 = vld [vmem:[%s5 + $0x38] sm:$0xf]
      %v1576 = vld [vmem:[%s5 + $0x3c] sm:$0xf]
      %v1577 = vld [vmem:[%s5 + $0x40] sm:$0xf]
      %v1578 = vld [vmem:[%s5 + $0x44] sm:$0xf]
      %v1579 = vld [vmem:[%s5 + $0x48] sm:$0xf]
      %v1580 = vld [vmem:[%s5 + $0x4c] sm:$0xf]
      %v1581 = vld [vmem:[%s5 + $0x50] sm:$0xf]
      %v1582 = vld [vmem:[%s5 + $0x54] sm:$0xf]
      %v1583 = vld [vmem:[%s5 + $0x58] sm:$0xf]
      %v1584 = vld [vmem:[%s5 + $0x5c] sm:$0xf]
      %v1585 = vld [vmem:[%s5 + $0x60] sm:$0xf]
      %v1586 = vld [vmem:[%s5 + $0x64] sm:$0xf]
      %v1587 = vld [vmem:[%s5 + $0x68] sm:$0xf]
      %v1588 = vld [vmem:[%s5 + $0x6c] sm:$0xf]
      %v1589 = vld [vmem:[%s5 + $0x70] sm:$0xf]
      %v1590 = vld [vmem:[%s5 + $0x74] sm:$0xf]
      %v1591 = vld [vmem:[%s5 + $0x78] sm:$0xf]
      %v1592 = vld [vmem:[%s5 + $0x7c] sm:$0xf]
      %v1593 = vld [vmem:[%s6] sm:$0x1]
      %v1595 = vlaneseq
      %v1596 = vshrl.u32 %v1595, 7
      %v1597 = vsub.s32 0, %v1596
      %v1598 = vrot.slane %v1593, %v1597
      %v1632 = vunpack.c.l.b16 %v1561
      %v1633 = vunpack.c.l.b16 %v1562
      %v1634 = vunpack.c.l.b16 %v1563
      %v1635 = vunpack.c.l.b16 %v1564
      %v1636 = vunpack.c.l.b16 %v1565
      %v1637 = vunpack.c.l.b16 %v1566
      %v1638 = vunpack.c.l.b16 %v1567
      %v1639 = vunpack.c.l.b16 %v1568
      %v1640 = vunpack.c.l.b16 %v1569
      %v1641 = vunpack.c.l.b16 %v1570
      %v1642 = vunpack.c.l.b16 %v1571
      %v1643 = vunpack.c.l.b16 %v1572
      %v1644 = vunpack.c.l.b16 %v1573
      %v1645 = vunpack.c.l.b16 %v1574
      %v1646 = vunpack.c.l.b16 %v1575
      %v1647 = vunpack.c.l.b16 %v1576
      %v1648 = vunpack.c.l.b16 %v1577
      %v1649 = vunpack.c.l.b16 %v1578
      %v1650 = vunpack.c.l.b16 %v1579
      %v1651 = vunpack.c.l.b16 %v1580
      %v1652 = vunpack.c.l.b16 %v1581
      %v1653 = vunpack.c.l.b16 %v1582
      %v1654 = vunpack.c.l.b16 %v1583
      %v1655 = vunpack.c.l.b16 %v1584
      %v1656 = vunpack.c.l.b16 %v1585
      %v1657 = vunpack.c.l.b16 %v1586
      %v1658 = vunpack.c.l.b16 %v1587
      %v1659 = vunpack.c.l.b16 %v1588
      %v1660 = vunpack.c.l.b16 %v1589
      %v1661 = vunpack.c.l.b16 %v1590
      %v1662 = vunpack.c.l.b16 %v1591
      %v1663 = vunpack.c.l.b16 %v1592
      %v1664 = vpack.c.b16 %v1633, %v1632
      %v1665 = vpack.c.b16 %v1635, %v1634
      %v1666 = vpack.c.b16 %v1637, %v1636
      %v1667 = vpack.c.b16 %v1639, %v1638
      %v1668 = vpack.c.b16 %v1641, %v1640
      %v1669 = vpack.c.b16 %v1643, %v1642
      %v1670 = vpack.c.b16 %v1645, %v1644
      %v1671 = vpack.c.b16 %v1647, %v1646
      %v1672 = vpack.c.b16 %v1649, %v1648
      %v1673 = vpack.c.b16 %v1651, %v1650
      %v1674 = vpack.c.b16 %v1653, %v1652
      %v1675 = vpack.c.b16 %v1655, %v1654
      %v1676 = vpack.c.b16 %v1657, %v1656
      %v1677 = vpack.c.b16 %v1659, %v1658
      %v1678 = vpack.c.b16 %v1661, %v1660
      %v1679 = vpack.c.b16 %v1663, %v1662
      %1696 = vmatprep.subr.bf16.mxu0 0
      %1697 = vmatpush1.bf16.msra.mxu0 %v1664
      %1698 = vmatprep.subr.bf16.mxu0 0
      %1699 = vmatpush1.bf16.msra.mxu0 %v1665
      %1700 = vmatprep.subr.bf16.mxu0 0
      %1701 = vmatpush1.bf16.msra.mxu0 %v1666
      %1702 = vmatprep.subr.bf16.mxu0 0
      %1703 = vmatpush1.bf16.msra.mxu0 %v1667
      %1704 = vmatprep.subr.bf16.mxu0 0
      %1705 = vmatpush1.bf16.msra.mxu0 %v1668
      %1706 = vmatprep.subr.bf16.mxu0 0
      %1707 = vmatpush1.bf16.msra.mxu0 %v1669
      %1708 = vmatprep.subr.bf16.mxu0 0
      %1709 = vmatpush1.bf16.msra.mxu0 %v1670
      %1710 = vmatprep.subr.bf16.mxu0 0
      %1711 = vmatpush1.bf16.msra.mxu0 %v1671
      %1712 = vmatprep.subr.bf16.mxu0 0
      %1713 = vmatpush1.bf16.msra.mxu0 %v1672
      %1714 = vmatprep.subr.bf16.mxu0 0
      %1715 = vmatpush1.bf16.msra.mxu0 %v1673
      %1716 = vmatprep.subr.bf16.mxu0 0
      %1717 = vmatpush1.bf16.msra.mxu0 %v1674
      %1718 = vmatprep.subr.bf16.mxu0 0
      %1719 = vmatpush1.bf16.msra.mxu0 %v1675
      %1720 = vmatprep.subr.bf16.mxu0 0
      %1721 = vmatpush1.bf16.msra.mxu0 %v1676
      %1722 = vmatprep.subr.bf16.mxu0 0
      %1723 = vmatpush1.bf16.msra.mxu0 %v1677
      %1724 = vmatprep.subr.bf16.mxu0 0
      %1725 = vmatpush1.bf16.msra.mxu0 %v1678
      %1726 = vmatprep.subr.bf16.mxu0 0
      %1727 = vmatpush1.bf16.msra.mxu0 %v1679
      %1728 = vmatprep.mubr.bf16.mxu0 %v1542
      %1729 = vmatmul.mubr.bf16.gmra.mrb[0].mxu0 %v1541
      %v1730 = vpop.f32.mrb[0].mxu0
      %v1731 = vadd.f32 %v1598, %v1730
      %v1732 = vpop.f32.mrb[0].mxu0
      %v1733 = vpop.f32.mrb[0].mxu0
      %v1734 = vadd.f32 %v1598, %v1733
      %v1735 = vpop.f32.mrb[0].mxu0
      %1736 = vmatprep.mubr.bf16.mxu0 %v1544
      %1737 = vmatmul.mubr.bf16.gmra.mrb[0].mxu0 %v1543
      %v1738 = vpop.f32.mrb[0].mxu0
      %v1739 = vadd.f32 %v1598, %v1738
      %v1740 = vpop.f32.mrb[0].mxu0
      %v1741 = vpop.f32.mrb[0].mxu0
      %v1742 = vadd.f32 %v1598, %v1741
      %v1743 = vpop.f32.mrb[0].mxu0
      %1744 = vmatprep.mubr.bf16.mxu0 %v1546
      %1745 = vmatmul.mubr.bf16.gmra.mrb[0].mxu0 %v1545
      %v1746 = vpop.f32.mrb[0].mxu0
      %v1747 = vadd.f32 %v1598, %v1746
      %v1748 = vpop.f32.mrb[0].mxu0
      %v1749 = vpop.f32.mrb[0].mxu0
      %v1750 = vadd.f32 %v1598, %v1749
      %v1751 = vpop.f32.mrb[0].mxu0
      %1752 = vmatprep.mubr.bf16.mxu0 %v1548
      %1753 = vmatmul.mubr.bf16.gmra.mrb[0].mxu0 %v1547
      %v1754 = vpop.f32.mrb[0].mxu0
      %v1755 = vadd.f32 %v1598, %v1754
      %v1756 = vpop.f32.mrb[0].mxu0
      %v1757 = vpop.f32.mrb[0].mxu0
      %v1758 = vadd.f32 %v1598, %v1757
      %v1759 = vpop.f32.mrb[0].mxu0
      %1760 = vmatprep.mubr.bf16.mxu0 %v1550
      %1761 = vmatmul.mubr.bf16.gmra.mrb[0].mxu0 %v1549
      %v1762 = vpop.f32.mrb[0].mxu0
      %v1763 = vadd.f32 %v1598, %v1762
      %v1764 = vpop.f32.mrb[0].mxu0
      %v1765 = vpop.f32.mrb[0].mxu0
      %v1766 = vadd.f32 %v1598, %v1765
      %v1767 = vpop.f32.mrb[0].mxu0
      %1768 = vmatprep.mubr.bf16.mxu0 %v1552
      %1769 = vmatmul.mubr.bf16.gmra.mrb[0].mxu0 %v1551
      %v1770 = vpop.f32.mrb[0].mxu0
      %v1771 = vadd.f32 %v1598, %v1770
      %v1772 = vpop.f32.mrb[0].mxu0
      %v1773 = vpop.f32.mrb[0].mxu0
      %v1774 = vadd.f32 %v1598, %v1773
      %v1775 = vpop.f32.mrb[0].mxu0
      %1776 = vmatprep.mubr.bf16.mxu0 %v1554
      %1777 = vmatmul.mubr.bf16.gmra.mrb[0].mxu0 %v1553
      %v1778 = vpop.f32.mrb[0].mxu0
      %v1779 = vadd.f32 %v1598, %v1778
      %v1780 = vpop.f32.mrb[0].mxu0
      %v1781 = vpop.f32.mrb[0].mxu0
      %v1782 = vadd.f32 %v1598, %v1781
      %v1783 = vpop.f32.mrb[0].mxu0
      %1784 = vmatprep.mubr.bf16.mxu0 %v1556
      %1785 = vmatmul.mubr.bf16.gmra.mrb[0].mxu0 %v1555
      %v1786 = vpop.f32.mrb[0].mxu0
      %v1787 = vadd.f32 %v1598, %v1786
      %v1788 = vpop.f32.mrb[0].mxu0
      %v1789 = vpop.f32.mrb[0].mxu0
      %v1790 = vadd.f32 %v1598, %v1789
      %v1791 = vpop.f32.mrb[0].mxu0
      %1792 = vmatprep.mubr.bf16.mxu0 %v1558
      %1793 = vmatmul.mubr.bf16.gmra.mrb[0].mxu0 %v1557
      %v1794 = vpop.f32.mrb[0].mxu0
      %v1795 = vadd.f32 %v1598, %v1794
      %v1796 = vpop.f32.mrb[0].mxu0
      %v1797 = vpop.f32.mrb[0].mxu0
      %v1798 = vadd.f32 %v1598, %v1797
      %v1799 = vpop.f32.mrb[0].mxu0
      %1800 = vmatprep.mubr.bf16.mxu0 %v1560
      %1801 = vmatmul.mubr.bf16.gmra.mrb[0].mxu0 %v1559
      %v1802 = vpop.f32.mrb[0].mxu0
      %v1803 = vadd.f32 %v1598, %v1802
      %v1804 = vpop.f32.mrb[0].mxu0
      %v1805 = vpop.f32.mrb[0].mxu0
      %v1806 = vpop.f32.mrb[0].mxu0
      %1807 = vdwg.mxu0
      %v1808 = vmax.f32 %v1731, 0.0
      %v1809 = vmax.f32 %v1734, 0.0
      %v1810 = vmax.f32 %v1739, 0.0
      %v1811 = vmax.f32 %v1742, 0.0
      %v1812 = vmax.f32 %v1747, 0.0
      %v1813 = vmax.f32 %v1750, 0.0
      %v1814 = vmax.f32 %v1755, 0.0
      %v1815 = vmax.f32 %v1758, 0.0
      %v1816 = vmax.f32 %v1763, 0.0
      %v1817 = vmax.f32 %v1766, 0.0
      %v1818 = vmax.f32 %v1771, 0.0
      %v1819 = vmax.f32 %v1774, 0.0
      %v1820 = vmax.f32 %v1779, 0.0
      %v1821 = vmax.f32 %v1782, 0.0
      %v1822 = vmax.f32 %v1787, 0.0
      %v1823 = vmax.f32 %v1790, 0.0
      %v1824 = vmax.f32 %v1795, 0.0
      %v1825 = vmax.f32 %v1798, 0.0
      %v1826 = vmax.f32 %v1803, 0.0
      %v1827 = vpack.c.bf16 %v1809, %v1808
      %v1828 = vpack.c.bf16 %v1811, %v1810
      %v1829 = vpack.c.bf16 %v1813, %v1812
      %v1830 = vpack.c.bf16 %v1815, %v1814
      %v1831 = vpack.c.bf16 %v1817, %v1816
      %v1832 = vpack.c.bf16 %v1819, %v1818
      %v1833 = vpack.c.bf16 %v1821, %v1820
      %v1834 = vpack.c.bf16 %v1823, %v1822
      %v1835 = vpack.c.bf16 %v1825, %v1824
      %v1836 = vpack.c.bf16 %v1826, %v1826
      %v1837 = vld [vmem:[%s7] sm:$0xf]
      %v1838 = vld [vmem:[%s7 + $0x4] sm:$0xf]
      %v1839 = vld [vmem:[%s7 + $0x8] sm:$0xf]
      %v1840 = vld [vmem:[%s7 + $0xc] sm:$0xf]
      %v1841 = vld [vmem:[%s7 + $0x10] sm:$0xf]
      %v1842 = vld [vmem:[%s7 + $0x14] sm:$0xf]
      %v1843 = vld [vmem:[%s7 + $0x18] sm:$0xf]
      %v1844 = vld [vmem:[%s7 + $0x1c] sm:$0xf]
      %v1845 = vld [vmem:[%s7 + $0x20] sm:$0xf]
      %v1846 = vld [vmem:[%s7 + $0x24] sm:$0xf]
      %v1847 = vld [vmem:[%s7 + $0x28] sm:$0xf]
      %v1848 = vld [vmem:[%s7 + $0x2c] sm:$0xf]
      %v1849 = vld [vmem:[%s7 + $0x30] sm:$0xf]
      %v1850 = vld [vmem:[%s7 + $0x34] sm:$0xf]
      %v1851 = vld [vmem:[%s7 + $0x38] sm:$0xf]
      %v1852 = vld [vmem:[%s7 + $0x3c] sm:$0xf]
      %v1853 = vld [vmem:[%s8] sm:$0x1]
      %v1855 = vlaneseq
      %v1856 = vshrl.u32 %v1855, 7
      %v1857 = vsub.s32 0, %v1856
      %v1858 = vrot.slane %v1853, %v1857
      %v1876 = vunpack.c.l.b16 %v1837
      %v1877 = vunpack.c.l.b16 %v1838
      %v1878 = vunpack.c.l.b16 %v1839
      %v1879 = vunpack.c.l.b16 %v1840
      %v1880 = vunpack.c.l.b16 %v1841
      %v1881 = vunpack.c.l.b16 %v1842
      %v1882 = vunpack.c.l.b16 %v1843
      %v1883 = vunpack.c.l.b16 %v1844
      %v1884 = vunpack.c.l.b16 %v1845
      %v1885 = vunpack.c.l.b16 %v1846
      %v1886 = vunpack.c.l.b16 %v1847
      %v1887 = vunpack.c.l.b16 %v1848
      %v1888 = vunpack.c.l.b16 %v1849
      %v1889 = vunpack.c.l.b16 %v1850
      %v1890 = vunpack.c.l.b16 %v1851
      %v1891 = vunpack.c.l.b16 %v1852
      %v1892 = vpack.c.b16 %v1877, %v1876
      %v1893 = vpack.c.b16 %v1879, %v1878
      %v1894 = vpack.c.b16 %v1881, %v1880
      %v1895 = vpack.c.b16 %v1883, %v1882
      %v1896 = vpack.c.b16 %v1885, %v1884
      %v1897 = vpack.c.b16 %v1887, %v1886
      %v1898 = vpack.c.b16 %v1889, %v1888
      %v1899 = vpack.c.b16 %v1891, %v1890
      %1908 = vmatprep.subr.bf16.mxu0 0
      %1909 = vmatpush1.bf16.msra.mxu0 %v1892
      %1910 = vmatprep.subr.bf16.mxu0 0
      %1911 = vmatpush1.bf16.msra.mxu0 %v1893
      %1912 = vmatprep.subr.bf16.mxu0 0
      %1913 = vmatpush1.bf16.msra.mxu0 %v1894
      %1914 = vmatprep.subr.bf16.mxu0 0
      %1915 = vmatpush1.bf16.msra.mxu0 %v1895
      %1916 = vmatprep.subr.bf16.mxu0 0
      %1917 = vmatpush1.bf16.msra.mxu0 %v1896
      %1918 = vmatprep.subr.bf16.mxu0 0
      %1919 = vmatpush1.bf16.msra.mxu0 %v1897
      %1920 = vmatprep.subr.bf16.mxu0 0
      %1921 = vmatpush1.bf16.msra.mxu0 %v1898
      %1922 = vmatprep.subr.bf16.mxu0 0
      %1923 = vmatpush1.bf16.msra.mxu0 %v1899
      %1924 = vmatprep.subr.bf16.mxu0 0
      %1925 = vmatpush1.bf16.msra.mxu0 0
      %1926 = vmatprep.subr.bf16.mxu0 0
      %1927 = vmatpush1.bf16.msra.mxu0 0
      %1928 = vmatprep.subr.bf16.mxu0 0
      %1929 = vmatpush1.bf16.msra.mxu0 0
      %1930 = vmatprep.subr.bf16.mxu0 0
      %1931 = vmatpush1.bf16.msra.mxu0 0
      %1932 = vmatprep.subr.bf16.mxu0 0
      %1933 = vmatpush1.bf16.msra.mxu0 0
      %1934 = vmatprep.subr.bf16.mxu0 0
      %1935 = vmatpush1.bf16.msra.mxu0 0
      %1936 = vmatprep.subr.bf16.mxu0 0
      %1937 = vmatpush1.bf16.msra.mxu0 0
      %1938 = vmatprep.subr.bf16.mxu0 0
      %1939 = vmatpush1.bf16.msra.mxu0 0
      %1940 = vmatprep.mubr.bf16.mxu0 0
      %1941 = vmatmul.mubr.bf16.gmra.mrb[0].mxu0 %v1827
      %v1942 = vpop.f32.mrb[0].mxu0
      %v1943 = vadd.f32 %v1858, %v1942
      %v1944 = vpop.f32.mrb[0].mxu0
      %v1945 = vpop.f32.mrb[0].mxu0
      %v1946 = vadd.f32 %v1858, %v1945
      %v1947 = vpop.f32.mrb[0].mxu0
      %1948 = vmatprep.mubr.bf16.mxu0 0
      %1949 = vmatmul.mubr.bf16.gmra.mrb[0].mxu0 %v1828
      %v1950 = vpop.f32.mrb[0].mxu0
      %v1951 = vadd.f32 %v1858, %v1950
      %v1952 = vpop.f32.mrb[0].mxu0
      %v1953 = vpop.f32.mrb[0].mxu0
      %v1954 = vadd.f32 %v1858, %v1953
      %v1955 = vpop.f32.mrb[0].mxu0
      %1956 = vmatprep.mubr.bf16.mxu0 0
      %1957 = vmatmul.mubr.bf16.gmra.mrb[0].mxu0 %v1829
      %v1958 = vpop.f32.mrb[0].mxu0
      %v1959 = vadd.f32 %v1858, %v1958
      %v1960 = vpop.f32.mrb[0].mxu0
      %v1961 = vpop.f32.mrb[0].mxu0
      %v1962 = vadd.f32 %v1858, %v1961
      %v1963 = vpop.f32.mrb[0].mxu0
      %1964 = vmatprep.mubr.bf16.mxu0 0
      %1965 = vmatmul.mubr.bf16.gmra.mrb[0].mxu0 %v1830
      %v1966 = vpop.f32.mrb[0].mxu0
      %v1967 = vadd.f32 %v1858, %v1966
      %v1968 = vpop.f32.mrb[0].mxu0
      %v1969 = vpop.f32.mrb[0].mxu0
      %v1970 = vadd.f32 %v1858, %v1969
      %v1971 = vpop.f32.mrb[0].mxu0
      %1972 = vmatprep.mubr.bf16.mxu0 0
      %1973 = vmatmul.mubr.bf16.gmra.mrb[0].mxu0 %v1831
      %v1974 = vpop.f32.mrb[0].mxu0
      %v1975 = vadd.f32 %v1858, %v1974
      %v1976 = vpop.f32.mrb[0].mxu0
      %v1977 = vpop.f32.mrb[0].mxu0
      %v1978 = vadd.f32 %v1858, %v1977
      %v1979 = vpop.f32.mrb[0].mxu0
      %1980 = vmatprep.mubr.bf16.mxu0 0
      %1981 = vmatmul.mubr.bf16.gmra.mrb[0].mxu0 %v1832
      %v1982 = vpop.f32.mrb[0].mxu0
      %v1983 = vadd.f32 %v1858, %v1982
      %v1984 = vpop.f32.mrb[0].mxu0
      %v1985 = vpop.f32.mrb[0].mxu0
      %v1986 = vadd.f32 %v1858, %v1985
      %v1987 = vpop.f32.mrb[0].mxu0
      %1988 = vmatprep.mubr.bf16.mxu0 0
      %1989 = vmatmul.mubr.bf16.gmra.mrb[0].mxu0 %v1833
      %v1990 = vpop.f32.mrb[0].mxu0
      %v1991 = vadd.f32 %v1858, %v1990
      %v1992 = vpop.f32.mrb[0].mxu0
      %v1993 = vpop.f32.mrb[0].mxu0
      %v1994 = vadd.f32 %v1858, %v1993
      %v1995 = vpop.f32.mrb[0].mxu0
      %1996 = vmatprep.mubr.bf16.mxu0 0
      %1997 = vmatmul.mubr.bf16.gmra.mrb[0].mxu0 %v1834
      %v1998 = vpop.f32.mrb[0].mxu0
      %v1999 = vadd.f32 %v1858, %v1998
      %v2000 = vpop.f32.mrb[0].mxu0
      %v2001 = vpop.f32.mrb[0].mxu0
      %v2002 = vadd.f32 %v1858, %v2001
      %v2003 = vpop.f32.mrb[0].mxu0
      %2004 = vmatprep.mubr.bf16.mxu0 0
      %2005 = vmatmul.mubr.bf16.gmra.mrb[0].mxu0 %v1835
      %v2006 = vpop.f32.mrb[0].mxu0
      %v2007 = vadd.f32 %v1858, %v2006
      %v2008 = vpop.f32.mrb[0].mxu0
      %v2009 = vpop.f32.mrb[0].mxu0
      %v2010 = vadd.f32 %v1858, %v2009
      %v2011 = vpop.f32.mrb[0].mxu0
      %2012 = vmatprep.mubr.bf16.mxu0 0
      %2013 = vmatmul.mubr.bf16.gmra.mrb[0].mxu0 %v1836
      %v2014 = vpop.f32.mrb[0].mxu0
      %v2015 = vadd.f32 %v1858, %v2014
      %v2016 = vpop.f32.mrb[0].mxu0
      %v2017 = vpop.f32.mrb[0].mxu0
      %v2018 = vpop.f32.mrb[0].mxu0
      %2019 = vdwg.mxu0
      %vm2020 = vcmask 64512
      %2021 = vst.msk [vmem:[%s334] sm:$0xff] %vm2020, %v1943
      %2022 = vst.msk [vmem:[%s334 + $0x8] sm:$0xff] %vm2020, %v1946
      %2023 = vst.msk [vmem:[%s334 + $0x10] sm:$0xff] %vm2020, %v1951
      %2024 = vst.msk [vmem:[%s334 + $0x18] sm:$0xff] %vm2020, %v1954
      %2025 = vst.msk [vmem:[%s334 + $0x20] sm:$0xff] %vm2020, %v1959
      %2026 = vst.msk [vmem:[%s334 + $0x28] sm:$0xff] %vm2020, %v1962
      %2027 = vst.msk [vmem:[%s334 + $0x30] sm:$0xff] %vm2020, %v1967
      %2028 = vst.msk [vmem:[%s334 + $0x38] sm:$0xff] %vm2020, %v1970
      %2029 = vst.msk [vmem:[%s334 + $0x40] sm:$0xff] %vm2020, %v1975
      %2030 = vst.msk [vmem:[%s334 + $0x48] sm:$0xff] %vm2020, %v1978
      %2031 = vst.msk [vmem:[%s334 + $0x50] sm:$0xff] %vm2020, %v1983
      %2032 = vst.msk [vmem:[%s334 + $0x58] sm:$0xff] %vm2020, %v1986
      %2033 = vst.msk [vmem:[%s334 + $0x60] sm:$0xff] %vm2020, %v1991
      %2034 = vst.msk [vmem:[%s334 + $0x68] sm:$0xff] %vm2020, %v1994
      %2035 = vst.msk [vmem:[%s334 + $0x70] sm:$0xff] %vm2020, %v1999
      %2036 = vst.msk [vmem:[%s334 + $0x78] sm:$0xff] %vm2020, %v2002
      %2037 = vst.msk [vmem:[%s334 + $0x80] sm:$0xff] %vm2020, %v2007
      %2038 = vst.msk [vmem:[%s334 + $0x88] sm:$0xff] %vm2020, %v2010
      %2039 = vst.msk [vmem:[%s334 + $0x90] sm:$0xff] %vm2020, %v2015
      %s2040 = smul.u32 19, %s20
      %p2041 = scmp.lt.s32.totalorder %s2040, 37
      %s2042 = scalar_select %p2041, %s2040, 37
      %s2043 = smul.addr %s2042, 8
      %s2044 = scalar_lea.vmem %s9, %s2043
      // Predicated region
      $region57: #{mlp_forward.1} parent=55 // pred_check
        %p2045 = pneg %p232
      $region58: #{mlp_forward.1} parent=55 // pred_check_branch
        %2047 = sbr.rel (%p2045) target = $region60
      $region59: #{mlp_forward.1} parent=55 // pred_region
        %s2048 = smul.u32 19, %s20
      $region60: #{mlp_forward.1} parent=55 // pred_fallthru
        _
    $region56: #{mlp_forward.1} parent=5 // pred_fallthru
      _
    %p2049 = scmp.le.s32.totalorder 2, %s15
    // Predicated region
    $region61: #{mlp_forward.1} parent=5 // pred_check
      %p2050 = pneg %p2049
    $region62: #{mlp_forward.1} parent=5 // pred_check_branch
      %2052 = sbr.rel (%p2050) target = $region64
    $region63: #{mlp_forward.1} parent=5 // pred_region
      %s2053 = ssub.s32 %s15, 2
      // Predicated region
      $region65: #{mlp_forward.1} parent=63 // pred_check
        %p2054 = pneg %p238
      $region66: #{mlp_forward.1} parent=63 // pred_check_branch
        %2056 = sbr.rel (%p2054) target = $region68
      $region67: #{mlp_forward.1} parent=63 // pred_region
        %s2057 = smul.u32 19, %s21
        %p2058 = scmp.lt.s32.totalorder %s2057, 37
        %s2059 = scalar_select %p2058, %s2057, 37
        %s2060 = smul.addr %s2059, 8
        %s2061 = scalar_lea.vmem %s9, %s2060
      $region68: #{mlp_forward.1} parent=63 // pred_fallthru
        _
    $region64: #{mlp_forward.1} parent=5 // pred_fallthru
      _
  $region6: #{mlp_forward.1} parent=0 // loop_footer
    %s19 = sadd.s32 1, %s15
  $region7: #{mlp_forward.1} parent=0 // loop_footer_branch
    %14 = sbr.rel target = $region3
  $region8: #{mlp_forward.1} parent=0 // loop_exit
    _

</llo_original>
